<compile_context>
chip_gen: v5e
topology: v5e:2x2
jax: 0.10.0
libtpu: 0.0.40
codegen_flags: <defaults>
</compile_context>

<pallas_src>
import functools

import jax
import jax.numpy as jnp
from jax.experimental import pallas as pl
from jax.experimental.pallas import tpu as pltpu

EPS_BN = 1e-5                   # torch.nn.BatchNorm1d default eps
MATMUL_DTYPE = jnp.bfloat16     # MXU operand dtype (f32 accumulation)
ACT_DTYPE = jnp.bfloat16        # HBM dtype of streamed intermediates (tiled path)
DEFAULT_TILE_M = 512            # batch rows per grid step (tiled fallback path)

# Conservative VMEM budgets that hold on v7x (64 MiB / TC) as well as
# v5e/v6e (128 MiB).
FUSED_VMEM_BUDGET = 24 * 1024 * 1024   # gate for the fully fused fast path
FUSED_VMEM_LIMIT = 32 * 1024 * 1024
TILED_VMEM_LIMIT = 48 * 1024 * 1024

_PARAMS_FUSED = pltpu.CompilerParams(
    dimension_semantics=("arbitrary",),
    vmem_limit_bytes=FUSED_VMEM_LIMIT,
)
_PARAMS_REDUCE = pltpu.CompilerParams(
    dimension_semantics=("arbitrary",),        # stats accumulate across the grid
    vmem_limit_bytes=TILED_VMEM_LIMIT,
)
_PARAMS_PARALLEL = pltpu.CompilerParams(
    dimension_semantics=("parallel",),         # independent batch tiles
    vmem_limit_bytes=TILED_VMEM_LIMIT,
)


def _round_up(x, m):
    return (x + m - 1) // m * m


# ---------------------------------------------------------------------------
# Fused fast path: whole FCN in a single VMEM-resident kernel (grid=(1,))
# ---------------------------------------------------------------------------
def _fused_fcn_kernel(*refs, n_layers, n_valid, has_pad):
    # refs = (x, w_0..w_{L-1}, gamma_0..gamma_{L-2}, beta_0..beta_{L-2}, out)
    x_ref = refs[0]
    w_refs = refs[1:1 + n_layers]
    g_refs = refs[1 + n_layers:2 * n_layers]
    b_refs = refs[2 * n_layers:3 * n_layers - 1]
    o_ref = refs[-1]

    inv_n = jnp.float32(1.0 / n_valid)
    h = x_ref[...].astype(jnp.float32)

    if has_pad:
        # Padded batch rows are zero in x -> contribute zero to sum / sum^2.
        # They only need re-zeroing after BN shift + ReLU make them non-zero.
        row = jax.lax.broadcasted_iota(jnp.int32, (h.shape[0], 1), 0)
        valid = row < n_valid

    for k in range(n_layers - 1):
        h = jnp.dot(h.astype(MATMUL_DTYPE), w_refs[k][...],
                    preferred_element_type=jnp.float32)
        s = jnp.sum(h, axis=0, keepdims=True)
        sq = jnp.sum(h * h, axis=0, keepdims=True)
        mean = s * inv_n
        var = jnp.maximum(sq * inv_n - mean * mean, 0.0)      # biased var, clamped
        scale = jax.lax.rsqrt(var + EPS_BN) * g_refs[k][...]   # EUP rsqrt, fold gamma
        shift = b_refs[k][...] - mean * scale
        h = jnp.maximum(h * scale + shift, 0.0)                # BN + affine + ReLU
        if has_pad:
            h = jnp.where(valid, h, 0.0)

    y = jnp.dot(h.astype(MATMUL_DTYPE), w_refs[-1][...],
                preferred_element_type=jnp.float32)
    s = jnp.sum(y, axis=0, keepdims=True)
    sq = jnp.sum(y * y, axis=0, keepdims=True)
    mean = s * inv_n
    var = jnp.maximum(sq * inv_n - mean * mean, 0.0)
    o_ref[...] = (y - mean) * jax.lax.rsqrt(var + EPS_BN)      # BN, affine=False


def _fused_forward(x_pad, weights_lp, gammas, betas, n_valid):
    n_pad, _ = x_pad.shape
    n_layers = len(weights_lp)
    d_out = weights_lp[-1].shape[1]
    kern = functools.partial(_fused_fcn_kernel, n_layers=n_layers,
                             n_valid=n_valid, has_pad=(n_pad != n_valid))
    const2d = lambda i: (0, 0)
    in_specs = [pl.BlockSpec(x_pad.shape, const2d)]
    in_specs += [pl.BlockSpec(w.shape, const2d) for w in weights_lp]
    in_specs += [pl.BlockSpec(g.shape, const2d) for g in gammas]
    in_specs += [pl.BlockSpec(b.shape, const2d) for b in betas]
    return pl.pallas_call(
        kern,
        grid=(1,),
        in_specs=in_specs,
        out_specs=pl.BlockSpec((n_pad, d_out), const2d),
        out_shape=jax.ShapeDtypeStruct((n_pad, d_out), jnp.float32),
        compiler_params=_PARAMS_FUSED,
    )(x_pad, *weights_lp, *gammas, *betas)


# ---------------------------------------------------------------------------
# Tiled fallback, kernel 1: h = x @ W  (+ grid-accumulated sum / sum^2)
# ---------------------------------------------------------------------------
def _linear_stats_kernel(x_ref, w_ref, h_ref, ssum_ref, ssq_ref):
    @pl.when(pl.program_id(0) == 0)
    def _init():
        ssum_ref[...] = jnp.zeros_like(ssum_ref)
        ssq_ref[...] = jnp.zeros_like(ssq_ref)

    h = jnp.dot(x_ref[...].astype(MATMUL_DTYPE), w_ref[...],   # weight pre-cast bf16
                preferred_element_type=jnp.float32)
    h_ref[...] = h.astype(h_ref.dtype)
    ssum_ref[...] += jnp.sum(h, axis=0, keepdims=True)
    ssq_ref[...] += jnp.sum(h * h, axis=0, keepdims=True)


def _tiled_linear_stats(x, w, tile_m):
    n_pad, d_in = x.shape
    d_out = w.shape[1]
    return pl.pallas_call(
        _linear_stats_kernel,
        grid=(n_pad // tile_m,),
        in_specs=[
            pl.BlockSpec((tile_m, d_in), lambda i: (i, 0)),   # streamed batch tile
            pl.BlockSpec((d_in, d_out), lambda i: (0, 0)),    # resident bf16 weight
        ],
        out_specs=(
            pl.BlockSpec((tile_m, d_out), lambda i: (i, 0)),  # streamed activation
            pl.BlockSpec((1, d_out), lambda i: (0, 0)),       # resident accumulator
            pl.BlockSpec((1, d_out), lambda i: (0, 0)),       # resident accumulator
        ),
        out_shape=(
            jax.ShapeDtypeStruct((n_pad, d_out), ACT_DTYPE),
            jax.ShapeDtypeStruct((1, d_out), jnp.float32),
            jax.ShapeDtypeStruct((1, d_out), jnp.float32),
        ),
        compiler_params=_PARAMS_REDUCE,
    )(x, w)


# ---------------------------------------------------------------------------
# Tiled fallback, kernel 2: BN(prev stats) -> affine -> ReLU -> Linear (+ stats)
# ---------------------------------------------------------------------------
def _bn_relu_linear_kernel(h_ref, ssum_ref, ssq_ref, g_ref, b_ref, w_ref,
                           y_ref, osum_ref, osq_ref, *, n_valid, tile_m, has_pad):
    i = pl.program_id(0)

    @pl.when(i == 0)
    def _init():
        osum_ref[...] = jnp.zeros_like(osum_ref)
        osq_ref[...] = jnp.zeros_like(osq_ref)

    inv_n = jnp.float32(1.0 / n_valid)
    mean = ssum_ref[...] * inv_n
    var = jnp.maximum(ssq_ref[...] * inv_n - mean * mean, 0.0)   # biased var, clamped
    scale = jax.lax.rsqrt(var + EPS_BN) * g_ref[...]
    shift = b_ref[...] - mean * scale

    hn = jnp.maximum(h_ref[...].astype(jnp.float32) * scale + shift, 0.0)

    if has_pad:
        # Zero the zero-padded batch rows (only present in the last tile) so
        # they do not pollute next-layer statistics.  Emitted only when the
        # batch was actually padded.
        row = i * tile_m + jax.lax.broadcasted_iota(jnp.int32, hn.shape, 0)
        hn = jnp.where(row < n_valid, hn, 0.0)

    y = jnp.dot(hn.astype(MATMUL_DTYPE), w_ref[...],
                preferred_element_type=jnp.float32)
    y_ref[...] = y.astype(y_ref.dtype)
    osum_ref[...] += jnp.sum(y, axis=0, keepdims=True)
    osq_ref[...] += jnp.sum(y * y, axis=0, keepdims=True)


def _tiled_bn_relu_linear(h, ssum, ssq, gamma, beta, w, tile_m, n_valid, has_pad):
    n_pad, d_in = h.shape
    d_out = w.shape[1]
    kern = functools.partial(_bn_relu_linear_kernel, n_valid=n_valid,
                             tile_m=tile_m, has_pad=has_pad)
    return pl.pallas_call(
        kern,
        grid=(n_pad // tile_m,),
        in_specs=[
            pl.BlockSpec((tile_m, d_in), lambda i: (i, 0)),   # streamed activation tile
            pl.BlockSpec((1, d_in), lambda i: (0, 0)),        # resident sum
            pl.BlockSpec((1, d_in), lambda i: (0, 0)),        # resident sum of squares
            pl.BlockSpec((1, d_in), lambda i: (0, 0)),        # resident gamma
            pl.BlockSpec((1, d_in), lambda i: (0, 0)),        # resident beta
            pl.BlockSpec((d_in, d_out), lambda i: (0, 0)),    # resident bf16 weight
        ],
        out_specs=(
            pl.BlockSpec((tile_m, d_out), lambda i: (i, 0)),
            pl.BlockSpec((1, d_out), lambda i: (0, 0)),
            pl.BlockSpec((1, d_out), lambda i: (0, 0)),
        ),
        out_shape=(
            jax.ShapeDtypeStruct((n_pad, d_out), ACT_DTYPE),
            jax.ShapeDtypeStruct((1, d_out), jnp.float32),
            jax.ShapeDtypeStruct((1, d_out), jnp.float32),
        ),
        compiler_params=_PARAMS_REDUCE,
    )(h, ssum, ssq, gamma, beta, w)


# ---------------------------------------------------------------------------
# Tiled fallback, kernel 3: final BatchNorm1d(affine=False)
# ---------------------------------------------------------------------------
def _bn_final_kernel(y_ref, ssum_ref, ssq_ref, o_ref, *, n_valid):
    inv_n = jnp.float32(1.0 / n_valid)
    mean = ssum_ref[...] * inv_n
    var = jnp.maximum(ssq_ref[...] * inv_n - mean * mean, 0.0)
    o_ref[...] = (y_ref[...].astype(jnp.float32) - mean) * jax.lax.rsqrt(var + EPS_BN)


def _tiled_bn_final(y, ssum, ssq, tile_m, n_valid):
    n_pad, d = y.shape
    kern = functools.partial(_bn_final_kernel, n_valid=n_valid)
    return pl.pallas_call(
        kern,
        grid=(n_pad // tile_m,),
        in_specs=[
            pl.BlockSpec((tile_m, d), lambda i: (i, 0)),
            pl.BlockSpec((1, d), lambda i: (0, 0)),
            pl.BlockSpec((1, d), lambda i: (0, 0)),
        ],
        out_specs=pl.BlockSpec((tile_m, d), lambda i: (i, 0)),
        out_shape=jax.ShapeDtypeStruct((n_pad, d), jnp.float32),
        compiler_params=_PARAMS_PARALLEL,
    )(y, ssum, ssq)


# ---------------------------------------------------------------------------
# Tile / path selection helpers
# ---------------------------------------------------------------------------
def _choose_tile_m(n, dims, tile_m):
    """Largest multiple-of-16 batch tile that keeps the per-step VMEM estimate
    (double-buffered streamed blocks + resident weight) under budget."""
    w_bytes = jnp.dtype(MATMUL_DTYPE).itemsize
    tile_m = max(16, min(tile_m, _round_up(n, 16)))
    tile_m = _round_up(tile_m, 16)

    def est(tm):
        worst = 0
        for d_in, d_out in zip(dims[:-1], dims[1:]):
            step = (2 * tm * d_in * 4            # streamed input tile (f32 worst case)
                    + 2 * tm * d_out * 4          # streamed output tile
                    + 2 * d_in * d_out * w_bytes)  # resident weight (double-buffered)
            worst = max(worst, step)
        return worst

    while tile_m > 128 and est(tile_m) > TILED_VMEM_LIMIT:
        tile_m //= 2
    return tile_m


def _fused_vmem_estimate(n_pad, dims):
    w_bytes = jnp.dtype(MATMUL_DTYPE).itemsize
    weights_b = sum(a * b for a, b in zip(dims[:-1], dims[1:])) * w_bytes
    io_b = n_pad * (dims[0] + dims[-1]) * 4
    act_b = n_pad * max(dims) * 4
    # 2x for double-buffered blocks, ~4 live copies of the largest activation.
    return 2 * (io_b + weights_b) + 4 * act_b


# ---------------------------------------------------------------------------
# FCN.forward — glue
# ---------------------------------------------------------------------------
def fcn_forward(x, params, *, tile_m=DEFAULT_TILE_M, force_tiled=False):
    """FCN forward with training-mode (batch-statistic) BatchNorm1d.

    params = (weights, gammas, betas):
      weights[k] : (d_k, d_{k+1})   torch Linear weight, transposed to (in, out)
      gammas[k], betas[k] : (1, d_{k+1})  BN affine params of hidden layer k
    """
    weights, gammas, betas = params
    assert len(weights) == len(gammas) + 1 == len(betas) + 1

    n = x.shape[0]
    dims = [weights[0].shape[0]] + [w.shape[1] for w in weights]
    x = x.astype(jnp.float32)
    gammas = [g.astype(jnp.float32) for g in gammas]
    betas = [b.astype(jnp.float32) for b in betas]
    # Pre-cast weights to the MXU operand dtype once: halves the resident VMEM
    # footprint and removes per-grid-step VPU casts.
    weights_lp = [w.astype(MATMUL_DTYPE) for w in weights]

    # ---- fully fused single-kernel fast path ------------------------------
    n_pad_f = _round_up(n, 16)
    if not force_tiled and _fused_vmem_estimate(n_pad_f, dims) <= FUSED_VMEM_BUDGET:
        x_pad = jnp.pad(x, ((0, n_pad_f - n), (0, 0))) if n_pad_f != n else x
        out = _fused_forward(x_pad, weights_lp, gammas, betas, n)
        return out[:n]

    # ---- tiled streaming fallback (large batches) -------------------------
    tile_m = _choose_tile_m(n, dims, tile_m)
    n_pad = _round_up(n, tile_m)
    has_pad = n_pad != n
    if has_pad:
        # zero rows contribute exactly zero to the first layer's sum / sum^2
        x = jnp.pad(x, ((0, n_pad - n), (0, 0)))

    h, ssum, ssq = _tiled_linear_stats(x, weights_lp[0], tile_m)
    for k in range(1, len(weights_lp)):
        h, ssum, ssq = _tiled_bn_relu_linear(
            h, ssum, ssq, gammas[k - 1], betas[k - 1], weights_lp[k],
            tile_m, n, has_pad)
    out = _tiled_bn_final(h, ssum, ssq, tile_m, n)
    return out[:n]


# ---------------------------------------------------------------------------
# Pure-JAX f32 reference (for the in-script correctness check)
# ---------------------------------------------------------------------------
def fcn_reference(x, params):
    weights, gammas, betas = params
    h = x.astype(jnp.float32)
    for k, w in enumerate(weights[:-1]):
        h = h @ w
        mean = jnp.mean(h, axis=0, keepdims=True)
        var = jnp.mean((h - mean) ** 2, axis=0, keepdims=True)
        h = (h - mean) / jnp.sqrt(var + EPS_BN) * gammas[k] + betas[k]
        h = jnp.maximum(h, 0.0)
    h = h @ weights[-1]
    mean = jnp.mean(h, axis=0, keepdims=True)
    var = jnp.mean((h - mean) ** 2, axis=0, keepdims=True)
    return (h - mean) / jnp.sqrt(var + EPS_BN)


if __name__ == "__main__":
    key = jax.random.PRNGKey(0)
    k_x, k_w1, k_w2, k_g, k_b = jax.random.split(key, 5)

    # dim_layer = [64, 256, 128]: Linear -> BN -> ReLU -> Linear -> BN(affine=False)
    # Feature dims are lane-dense (multiples of 128 where it matters); batch=500
    # is deliberately not a tile multiple to exercise the pad/mask path.
    dim_layer = [64, 256, 128]
    batch = 500

    w1 = jax.random.normal(k_w1, (dim_layer[0], dim_layer[1]), jnp.float32)
    w1 = w1 / jnp.sqrt(float(dim_layer[0]))
    w2 = jax.random.normal(k_w2, (dim_layer[1], dim_layer[2]), jnp.float32)
    w2 = w2 / jnp.sqrt(float(dim_layer[1]))
    gamma1 = 1.0 + 0.1 * jax.random.normal(k_g, (1, dim_layer[1]), jnp.float32)
    beta1 = 0.1 * jax.random.normal(k_b, (1, dim_layer[1]), jnp.float32)
    params = ((w1, w2), (gamma1,), (beta1,))

    x = jax.random.normal(k_x, (batch, dim_layer[0]), jnp.float32)

    ref = fcn_reference(x, params)

    # Fast path: entire network fused into one VMEM-resident pallas_call.
    out_fused = jax.block_until_ready(fcn_forward(x, params))
    # Streaming fallback path: small tile forces a multi-step grid reduction.
    out_tiled = jax.block_until_ready(
        fcn_forward(x, params, tile_m=128, force_tiled=True))

    for name, out in (("fused", out_fused), ("tiled", out_tiled)):
        assert out.shape == (batch, dim_layer[-1]), (name, out.shape)
        assert bool(jnp.all(jnp.isfinite(out))), name
        # bf16 MXU operands / bf16 streamed intermediates with f32 accumulation
        # and f32 BN stats -> small abs error on a unit-variance output.
        max_err = float(jnp.max(jnp.abs(out - ref)))
        assert max_err < 0.15, f"{name}: max abs error vs f32 reference: {max_err}"

    print("KERNEL_OK")
</pallas_src>

<mosaic_0001>
module attributes {stable_mosaic.version = 11 : i64} {
  func.func @_fused_fcn_kernel(%arg0: i32, %arg1: memref<512x64xf32, #tpu.memory_space<vmem>>, %arg2: memref<64x256xbf16, #tpu.memory_space<vmem>>, %arg3: memref<256x128xbf16, #tpu.memory_space<vmem>>, %arg4: memref<1x256xf32, #tpu.memory_space<vmem>>, %arg5: memref<1x256xf32, #tpu.memory_space<vmem>>, %arg6: memref<512x128xf32, #tpu.memory_space<vmem>>) attributes {dimension_semantics = [#tpu.dimension_semantics<arbitrary>], iteration_bounds = array<i64: 1>, scalar_prefetch = 0 : i64, scratch_operands = 0 : i64, tpu.core_type = #tpu.core_type<tc>, window_params = [{pipeline_mode = #tpu.pipeline_mode<synchronous>, transform_indices = @transform_0, window_bounds = array<i64: 512, 64>}, {pipeline_mode = #tpu.pipeline_mode<synchronous>, transform_indices = @transform_1, window_bounds = array<i64: 64, 256>}, {pipeline_mode = #tpu.pipeline_mode<synchronous>, transform_indices = @transform_2, window_bounds = array<i64: 256, 128>}, {pipeline_mode = #tpu.pipeline_mode<synchronous>, transform_indices = @transform_3, window_bounds = array<i64: 1, 256>}, {pipeline_mode = #tpu.pipeline_mode<synchronous>, transform_indices = @transform_4, window_bounds = array<i64: 1, 256>}, {pipeline_mode = #tpu.pipeline_mode<synchronous>, transform_indices = @transform_5, window_bounds = array<i64: 512, 128>}]} {
    %c0 = arith.constant 0 : index
    %c0_0 = arith.constant 0 : index
    %0 = vector.load %arg1[%c0, %c0_0] : memref<512x64xf32, #tpu.memory_space<vmem>>, vector<512x64xf32>
    %1 = tpu.iota {dimensions = array<i32: 0>} : vector<512x1xi32>
    %c500_i32 = arith.constant 500 : i32
    %2 = vector.broadcast %c500_i32 : i32 to vector<512x1xi32>
    %3 = arith.cmpi slt, %1, %2 : vector<512x1xi32>
    %4 = arith.truncf %0 : vector<512x64xf32> to vector<512x64xbf16>
    %c0_1 = arith.constant 0 : index
    %c0_2 = arith.constant 0 : index
    %5 = vector.load %arg2[%c0_1, %c0_2] : memref<64x256xbf16, #tpu.memory_space<vmem>>, vector<64x256xbf16>
    %cst = arith.constant dense<0.000000e+00> : vector<512x256xf32>
    %6 = tpu.matmul %4, %5, %cst {dimension_numbers = #tpu.dot_dimension_numbers<[1], [0], [0], [1], [0, 0, 1, 1], [], []>} : vector<512x64xbf16>, vector<64x256xbf16>, vector<512x256xf32> -> vector<512x256xf32>
    %cst_3 = arith.constant dense<0.000000e+00> : vector<256xf32>
    %7 = vector.multi_reduction <add>, %6, %cst_3 [0] : vector<512x256xf32> to vector<256xf32>
    %8 = vector.shape_cast %7 : vector<256xf32> to vector<1x256xf32>
    %9 = arith.mulf %6, %6 : vector<512x256xf32>
    %cst_4 = arith.constant dense<0.000000e+00> : vector<256xf32>
    %10 = vector.multi_reduction <add>, %9, %cst_4 [0] : vector<512x256xf32> to vector<256xf32>
    %11 = vector.shape_cast %10 : vector<256xf32> to vector<1x256xf32>
    %cst_5 = arith.constant 2.000000e-03 : f32
    %12 = vector.broadcast %cst_5 : f32 to vector<1x256xf32>
    %13 = arith.mulf %8, %12 : vector<1x256xf32>
    %cst_6 = arith.constant 2.000000e-03 : f32
    %14 = vector.broadcast %cst_6 : f32 to vector<1x256xf32>
    %15 = arith.mulf %11, %14 : vector<1x256xf32>
    %16 = arith.mulf %13, %13 : vector<1x256xf32>
    %17 = arith.subf %15, %16 : vector<1x256xf32>
    %cst_7 = arith.constant 0.000000e+00 : f32
    %18 = vector.broadcast %cst_7 : f32 to vector<1x256xf32>
    %19 = arith.maximumf %17, %18 : vector<1x256xf32>
    %cst_8 = arith.constant 9.99999974E-6 : f32
    %20 = vector.broadcast %cst_8 : f32 to vector<1x256xf32>
    %21 = arith.addf %19, %20 : vector<1x256xf32>
    %22 = math.rsqrt %21 : vector<1x256xf32>
    %c0_9 = arith.constant 0 : index
    %c0_10 = arith.constant 0 : index
    %23 = vector.load %arg4[%c0_9, %c0_10] : memref<1x256xf32, #tpu.memory_space<vmem>>, vector<1x256xf32>
    %24 = arith.mulf %22, %23 : vector<1x256xf32>
    %c0_11 = arith.constant 0 : index
    %c0_12 = arith.constant 0 : index
    %25 = vector.load %arg5[%c0_11, %c0_12] : memref<1x256xf32, #tpu.memory_space<vmem>>, vector<1x256xf32>
    %26 = arith.mulf %13, %24 : vector<1x256xf32>
    %27 = arith.subf %25, %26 : vector<1x256xf32>
    %28 = vector.broadcast %24 : vector<1x256xf32> to vector<512x256xf32>
    %29 = arith.mulf %6, %28 : vector<512x256xf32>
    %30 = vector.broadcast %27 : vector<1x256xf32> to vector<512x256xf32>
    %31 = arith.addf %29, %30 : vector<512x256xf32>
    %cst_13 = arith.constant 0.000000e+00 : f32
    %32 = vector.broadcast %cst_13 : f32 to vector<512x256xf32>
    %33 = arith.maximumf %31, %32 : vector<512x256xf32>
    %cst_14 = arith.constant 0.000000e+00 : f32
    %34 = vector.shape_cast %3 : vector<512x1xi1> to vector<512x1xi1>
    %35 = vector.broadcast %34 : vector<512x1xi1> to vector<512x256xi1>
    %36 = vector.broadcast %cst_14 : f32 to vector<512x256xf32>
    %37 = arith.select %35, %33, %36 : vector<512x256xi1>, vector<512x256xf32>
    %38 = arith.truncf %37 : vector<512x256xf32> to vector<512x256xbf16>
    %c0_15 = arith.constant 0 : index
    %c0_16 = arith.constant 0 : index
    %39 = vector.load %arg3[%c0_15, %c0_16] : memref<256x128xbf16, #tpu.memory_space<vmem>>, vector<256x128xbf16>
    %cst_17 = arith.constant dense<0.000000e+00> : vector<512x128xf32>
    %40 = tpu.matmul %38, %39, %cst_17 {dimension_numbers = #tpu.dot_dimension_numbers<[1], [0], [0], [1], [0, 0, 1, 1], [], []>} : vector<512x256xbf16>, vector<256x128xbf16>, vector<512x128xf32> -> vector<512x128xf32>
    %cst_18 = arith.constant dense<0.000000e+00> : vector<128xf32>
    %41 = vector.multi_reduction <add>, %40, %cst_18 [0] : vector<512x128xf32> to vector<128xf32>
    %42 = vector.shape_cast %41 : vector<128xf32> to vector<1x128xf32>
    %43 = arith.mulf %40, %40 : vector<512x128xf32>
    %cst_19 = arith.constant dense<0.000000e+00> : vector<128xf32>
    %44 = vector.multi_reduction <add>, %43, %cst_19 [0] : vector<512x128xf32> to vector<128xf32>
    %45 = vector.shape_cast %44 : vector<128xf32> to vector<1x128xf32>
    %cst_20 = arith.constant 2.000000e-03 : f32
    %46 = vector.broadcast %cst_20 : f32 to vector<1x128xf32>
    %47 = arith.mulf %42, %46 : vector<1x128xf32>
    %cst_21 = arith.constant 2.000000e-03 : f32
    %48 = vector.broadcast %cst_21 : f32 to vector<1x128xf32>
    %49 = arith.mulf %45, %48 : vector<1x128xf32>
    %50 = arith.mulf %47, %47 : vector<1x128xf32>
    %51 = arith.subf %49, %50 : vector<1x128xf32>
    %cst_22 = arith.constant 0.000000e+00 : f32
    %52 = vector.broadcast %cst_22 : f32 to vector<1x128xf32>
    %53 = arith.maximumf %51, %52 : vector<1x128xf32>
    %54 = vector.broadcast %47 : vector<1x128xf32> to vector<512x128xf32>
    %55 = arith.subf %40, %54 : vector<512x128xf32>
    %cst_23 = arith.constant 9.99999974E-6 : f32
    %56 = vector.broadcast %cst_23 : f32 to vector<1x128xf32>
    %57 = arith.addf %53, %56 : vector<1x128xf32>
    %58 = math.rsqrt %57 : vector<1x128xf32>
    %59 = vector.broadcast %58 : vector<1x128xf32> to vector<512x128xf32>
    %60 = arith.mulf %55, %59 : vector<512x128xf32>
    %c0_24 = arith.constant 0 : index
    %c0_25 = arith.constant 0 : index
    %61 = vector.load %arg6[%c0_24, %c0_25] : memref<512x128xf32, #tpu.memory_space<vmem>>, vector<512x128xf32>
    tpu.vector_store %arg6[%c0_24, %c0_25], %60 {strides = array<i32>} : memref<512x128xf32, #tpu.memory_space<vmem>>, vector<512x128xf32>,
    return
  }
  func.func @transform_0(%arg0: i32) -> (i32, i32) {
    %c0_i32 = arith.constant 0 : i32
    %c0_i32_0 = arith.constant 0 : i32
    %c0_i32_1 = arith.constant 0 : i32
    return %c0_i32, %c0_i32_0 : i32, i32
  }
  func.func @transform_1(%arg0: i32) -> (i32, i32) {
    %c0_i32 = arith.constant 0 : i32
    %c0_i32_0 = arith.constant 0 : i32
    %c0_i32_1 = arith.constant 0 : i32
    return %c0_i32, %c0_i32_0 : i32, i32
  }
  func.func @transform_2(%arg0: i32) -> (i32, i32) {
    %c0_i32 = arith.constant 0 : i32
    %c0_i32_0 = arith.constant 0 : i32
    %c0_i32_1 = arith.constant 0 : i32
    return %c0_i32, %c0_i32_0 : i32, i32
  }
  func.func @transform_3(%arg0: i32) -> (i32, i32) {
    %c0_i32 = arith.constant 0 : i32
    %c0_i32_0 = arith.constant 0 : i32
    %c0_i32_1 = arith.constant 0 : i32
    return %c0_i32, %c0_i32_0 : i32, i32
  }
  func.func @transform_4(%arg0: i32) -> (i32, i32) {
    %c0_i32 = arith.constant 0 : i32
    %c0_i32_0 = arith.constant 0 : i32
    %c0_i32_1 = arith.constant 0 : i32
    return %c0_i32, %c0_i32_0 : i32, i32
  }
  func.func @transform_5(%arg0: i32) -> (i32, i32) {
    %c0_i32 = arith.constant 0 : i32
    %c0_i32_0 = arith.constant 0 : i32
    %c0_i32_1 = arith.constant 0 : i32
    return %c0_i32, %c0_i32_0 : i32, i32
  }
}

</mosaic_0001>

<llo_original>
// kernel: tpu_custom_call.1
$region0: #{tpu_custom_call.1}
  #allocation0 [shape = 'u32[]', space=smem, size = 0x4, offset = 0x4, fixed_abs, tag = 'smem constant byte address 0x4 - core index']
  #allocation1 [shape = 'u32[72,128]{1,0:T(1,128)}', space=vmem, size = 0x9000, scoped, tag = 'internal scratch']
  %s0 = inlined_call_operand.vmem [shape: f32[512,64], index: 0, kind: input, shape index: {}]
  %s1 = inlined_call_operand.vmem [shape: bf16[64,256], index: 1, kind: input, shape index: {}]
  %s2 = inlined_call_operand.vmem [shape: bf16[256,128], index: 2, kind: input, shape index: {}]
  %s3 = inlined_call_operand.vmem [shape: f32[1,256], index: 3, kind: input, shape index: {}]
  %s4 = inlined_call_operand.vmem [shape: f32[1,256], index: 4, kind: input, shape index: {}]
  %s5 = inlined_call_operand.hbm [shape: f32[512,128], index: 5, kind: output, shape index: {}]
  %s6 = sld [smem:[#allocation0]]
  $region30: #{tpu_custom_call.1} parent=0
    _
  %s8 = ssub.s32 1, %s6
  %s9 = scalar_select 0, %s8, %s6
  $region1: #{tpu_custom_call.1} parent=0
    #allocation2 [shape = 'u8[262144]{0}', space=vmem, size = 0x40000, scoped, tag = 'output window, operand 0, single buffered']
    #allocation3 [shape = 's32[1]{0}', space=sflag, size = 0x4, scoped, tag = 'scoped memory for tpu_custom_call.1']
    %10 = vsyncpa [#allocation3], 0
    // Predicated region
    $region2: #{tpu_custom_call.1} parent=1 // pred_check
      _
    $region3: #{tpu_custom_call.1} parent=1 // pred_check_branch
      %12 = sbr.rel (0) target = $region5
    $region4: #{tpu_custom_call.1} parent=1 // pred_region
      _
    $region5: #{tpu_custom_call.1} parent=1 // pred_fallthru
      _
    // Predicated region
    $region6: #{tpu_custom_call.1} parent=1 // pred_check
      _
    $region7: #{tpu_custom_call.1} parent=1 // pred_check_branch
      %14 = sbr.rel (0) target = $region9
    $region8: #{tpu_custom_call.1} parent=1 // pred_region
      _
    $region9: #{tpu_custom_call.1} parent=1 // pred_fallthru
      _
    // Predicated region
    $region10: #{tpu_custom_call.1} parent=1 // pred_check
      _
    $region11: #{tpu_custom_call.1} parent=1 // pred_check_branch
      %16 = sbr.rel (0) target = $region13
    $region12: #{tpu_custom_call.1} parent=1 // pred_region
      _
    $region13: #{tpu_custom_call.1} parent=1 // pred_fallthru
      _
    // Predicated region
    $region14: #{tpu_custom_call.1} parent=1 // pred_check
      _
    $region15: #{tpu_custom_call.1} parent=1 // pred_check_branch
      %18 = sbr.rel (0) target = $region17
    $region16: #{tpu_custom_call.1} parent=1 // pred_region
      _
    $region17: #{tpu_custom_call.1} parent=1 // pred_fallthru
      _
    // Predicated region
    $region18: #{tpu_custom_call.1} parent=1 // pred_check
      _
    $region19: #{tpu_custom_call.1} parent=1 // pred_check_branch
      %20 = sbr.rel (0) target = $region21
    $region20: #{tpu_custom_call.1} parent=1 // pred_region
      _
    $region21: #{tpu_custom_call.1} parent=1 // pred_fallthru
      _
    %v22 = vld [vmem:[%s0] sm:$0xff]
    %v23 = vld [vmem:[%s0 + $0x8] sm:$0xff]
    %v24 = vld [vmem:[%s0 + $0x10] sm:$0xff]
    %v25 = vld [vmem:[%s0 + $0x18] sm:$0xff]
    %v26 = vld [vmem:[%s0 + $0x20] sm:$0xff]
    %v27 = vld [vmem:[%s0 + $0x28] sm:$0xff]
    %v28 = vld [vmem:[%s0 + $0x30] sm:$0xff]
    %v29 = vld [vmem:[%s0 + $0x38] sm:$0xff]
    %v30 = vld [vmem:[%s0 + $0x40] sm:$0xff]
    %v31 = vld [vmem:[%s0 + $0x48] sm:$0xff]
    %v32 = vld [vmem:[%s0 + $0x50] sm:$0xff]
    %v33 = vld [vmem:[%s0 + $0x58] sm:$0xff]
    %v34 = vld [vmem:[%s0 + $0x60] sm:$0xff]
    %v35 = vld [vmem:[%s0 + $0x68] sm:$0xff]
    %v36 = vld [vmem:[%s0 + $0x70] sm:$0xff]
    %v37 = vld [vmem:[%s0 + $0x78] sm:$0xff]
    %v38 = vld [vmem:[%s0 + $0x80] sm:$0xff]
    %v39 = vld [vmem:[%s0 + $0x88] sm:$0xff]
    %v40 = vld [vmem:[%s0 + $0x90] sm:$0xff]
    %v41 = vld [vmem:[%s0 + $0x98] sm:$0xff]
    %v42 = vld [vmem:[%s0 + $0xa0] sm:$0xff]
    %v43 = vld [vmem:[%s0 + $0xa8] sm:$0xff]
    %v44 = vld [vmem:[%s0 + $0xb0] sm:$0xff]
    %v45 = vld [vmem:[%s0 + $0xb8] sm:$0xff]
    %v46 = vld [vmem:[%s0 + $0xc0] sm:$0xff]
    %v47 = vld [vmem:[%s0 + $0xc8] sm:$0xff]
    %v48 = vld [vmem:[%s0 + $0xd0] sm:$0xff]
    %v49 = vld [vmem:[%s0 + $0xd8] sm:$0xff]
    %v50 = vld [vmem:[%s0 + $0xe0] sm:$0xff]
    %v51 = vld [vmem:[%s0 + $0xe8] sm:$0xff]
    %v52 = vld [vmem:[%s0 + $0xf0] sm:$0xff]
    %v53 = vld [vmem:[%s0 + $0xf8] sm:$0xff]
    %v54 = vld [vmem:[%s0 + $0x100] sm:$0xff]
    %v55 = vld [vmem:[%s0 + $0x108] sm:$0xff]
    %v56 = vld [vmem:[%s0 + $0x110] sm:$0xff]
    %v57 = vld [vmem:[%s0 + $0x118] sm:$0xff]
    %v58 = vld [vmem:[%s0 + $0x120] sm:$0xff]
    %v59 = vld [vmem:[%s0 + $0x128] sm:$0xff]
    %v60 = vld [vmem:[%s0 + $0x130] sm:$0xff]
    %v61 = vld [vmem:[%s0 + $0x138] sm:$0xff]
    %v62 = vld [vmem:[%s0 + $0x140] sm:$0xff]
    %v63 = vld [vmem:[%s0 + $0x148] sm:$0xff]
    %v64 = vld [vmem:[%s0 + $0x150] sm:$0xff]
    %v65 = vld [vmem:[%s0 + $0x158] sm:$0xff]
    %v66 = vld [vmem:[%s0 + $0x160] sm:$0xff]
    %v67 = vld [vmem:[%s0 + $0x168] sm:$0xff]
    %v68 = vld [vmem:[%s0 + $0x170] sm:$0xff]
    %v69 = vld [vmem:[%s0 + $0x178] sm:$0xff]
    %v70 = vld [vmem:[%s0 + $0x180] sm:$0xff]
    %v71 = vld [vmem:[%s0 + $0x188] sm:$0xff]
    %v72 = vld [vmem:[%s0 + $0x190] sm:$0xff]
    %v73 = vld [vmem:[%s0 + $0x198] sm:$0xff]
    %v74 = vld [vmem:[%s0 + $0x1a0] sm:$0xff]
    %v75 = vld [vmem:[%s0 + $0x1a8] sm:$0xff]
    %v76 = vld [vmem:[%s0 + $0x1b0] sm:$0xff]
    %v77 = vld [vmem:[%s0 + $0x1b8] sm:$0xff]
    %v78 = vld [vmem:[%s0 + $0x1c0] sm:$0xff]
    %v79 = vld [vmem:[%s0 + $0x1c8] sm:$0xff]
    %v80 = vld [vmem:[%s0 + $0x1d0] sm:$0xff]
    %v81 = vld [vmem:[%s0 + $0x1d8] sm:$0xff]
    %v82 = vld [vmem:[%s0 + $0x1e0] sm:$0xff]
    %v83 = vld [vmem:[%s0 + $0x1e8] sm:$0xff]
    %v84 = vld [vmem:[%s0 + $0x1f0] sm:$0xff]
    %v85 = vld [vmem:[%s0 + $0x1f8] sm:$0xff]
    %v86 = vlaneseq
    %v87 = vshrl.u32 %v86, 7
    %v88 = vadd.s32 %v87, 8
    %v89 = vadd.s32 %v87, 16
    %v90 = vadd.s32 %v87, 24
    %v91 = vadd.s32 %v87, 32
    %v92 = vadd.s32 %v87, 40
    %v93 = vadd.s32 %v87, 48
    %v94 = vadd.s32 %v87, 56
    %v95 = vadd.s32 %v87, 64
    %v96 = vadd.s32 %v87, 72
    %v97 = vadd.s32 %v87, 80
    %v98 = vadd.s32 %v87, 88
    %v99 = vadd.s32 %v87, 96
    %v100 = vadd.s32 %v87, 104
    %v101 = vadd.s32 %v87, 112
    %v102 = vadd.s32 %v87, 120
    %v103 = vadd.s32 %v87, 128
    %v104 = vadd.s32 %v87, 136
    %v105 = vadd.s32 %v87, 144
    %v106 = vadd.s32 %v87, 152
    %v107 = vadd.s32 %v87, 160
    %v108 = vadd.s32 %v87, 168
    %v109 = vadd.s32 %v87, 176
    %v110 = vadd.s32 %v87, 184
    %v111 = vadd.s32 %v87, 192
    %v112 = vadd.s32 %v87, 200
    %v113 = vadd.s32 %v87, 208
    %v114 = vadd.s32 %v87, 216
    %v115 = vadd.s32 %v87, 224
    %v116 = vadd.s32 %v87, 232
    %v117 = vadd.s32 %v87, 240
    %v118 = vadd.s32 %v87, 248
    %v119 = vadd.s32 %v87, 256
    %v120 = vadd.s32 %v87, 264
    %v121 = vadd.s32 %v87, 272
    %v122 = vadd.s32 %v87, 280
    %v123 = vadd.s32 %v87, 288
    %v124 = vadd.s32 %v87, 296
    %v125 = vadd.s32 %v87, 304
    %v126 = vadd.s32 %v87, 312
    %v127 = vadd.s32 %v87, 320
    %v128 = vadd.s32 %v87, 328
    %v129 = vadd.s32 %v87, 336
    %v130 = vadd.s32 %v87, 344
    %v131 = vadd.s32 %v87, 352
    %v132 = vadd.s32 %v87, 360
    %v133 = vadd.s32 %v87, 368
    %v134 = vadd.s32 %v87, 376
    %v135 = vadd.s32 %v87, 384
    %v136 = vadd.s32 %v87, 392
    %v137 = vadd.s32 %v87, 400
    %v138 = vadd.s32 %v87, 408
    %v139 = vadd.s32 %v87, 416
    %v140 = vadd.s32 %v87, 424
    %v141 = vadd.s32 %v87, 432
    %v142 = vadd.s32 %v87, 440
    %v143 = vadd.s32 %v87, 448
    %v144 = vadd.s32 %v87, 456
    %v145 = vadd.s32 %v87, 464
    %v146 = vadd.s32 %v87, 472
    %v147 = vadd.s32 %v87, 480
    %v148 = vadd.s32 %v87, 488
    %v149 = vadd.s32 %v87, 496
    %v150 = vadd.s32 %v87, 504
    %vm151 = vcmp.lt.s32.totalorder %v87, 500
    %vm152 = vcmp.lt.s32.totalorder %v88, 500
    %vm153 = vcmp.lt.s32.totalorder %v89, 500
    %vm154 = vcmp.lt.s32.totalorder %v90, 500
    %vm155 = vcmp.lt.s32.totalorder %v91, 500
    %vm156 = vcmp.lt.s32.totalorder %v92, 500
    %vm157 = vcmp.lt.s32.totalorder %v93, 500
    %vm158 = vcmp.lt.s32.totalorder %v94, 500
    %vm159 = vcmp.lt.s32.totalorder %v95, 500
    %vm160 = vcmp.lt.s32.totalorder %v96, 500
    %vm161 = vcmp.lt.s32.totalorder %v97, 500
    %vm162 = vcmp.lt.s32.totalorder %v98, 500
    %vm163 = vcmp.lt.s32.totalorder %v99, 500
    %vm164 = vcmp.lt.s32.totalorder %v100, 500
    %vm165 = vcmp.lt.s32.totalorder %v101, 500
    %vm166 = vcmp.lt.s32.totalorder %v102, 500
    %vm167 = vcmp.lt.s32.totalorder %v103, 500
    %vm168 = vcmp.lt.s32.totalorder %v104, 500
    %vm169 = vcmp.lt.s32.totalorder %v105, 500
    %vm170 = vcmp.lt.s32.totalorder %v106, 500
    %vm171 = vcmp.lt.s32.totalorder %v107, 500
    %vm172 = vcmp.lt.s32.totalorder %v108, 500
    %vm173 = vcmp.lt.s32.totalorder %v109, 500
    %vm174 = vcmp.lt.s32.totalorder %v110, 500
    %vm175 = vcmp.lt.s32.totalorder %v111, 500
    %vm176 = vcmp.lt.s32.totalorder %v112, 500
    %vm177 = vcmp.lt.s32.totalorder %v113, 500
    %vm178 = vcmp.lt.s32.totalorder %v114, 500
    %vm179 = vcmp.lt.s32.totalorder %v115, 500
    %vm180 = vcmp.lt.s32.totalorder %v116, 500
    %vm181 = vcmp.lt.s32.totalorder %v117, 500
    %vm182 = vcmp.lt.s32.totalorder %v118, 500
    %vm183 = vcmp.lt.s32.totalorder %v119, 500
    %vm184 = vcmp.lt.s32.totalorder %v120, 500
    %vm185 = vcmp.lt.s32.totalorder %v121, 500
    %vm186 = vcmp.lt.s32.totalorder %v122, 500
    %vm187 = vcmp.lt.s32.totalorder %v123, 500
    %vm188 = vcmp.lt.s32.totalorder %v124, 500
    %vm189 = vcmp.lt.s32.totalorder %v125, 500
    %vm190 = vcmp.lt.s32.totalorder %v126, 500
    %vm191 = vcmp.lt.s32.totalorder %v127, 500
    %vm192 = vcmp.lt.s32.totalorder %v128, 500
    %vm193 = vcmp.lt.s32.totalorder %v129, 500
    %vm194 = vcmp.lt.s32.totalorder %v130, 500
    %vm195 = vcmp.lt.s32.totalorder %v131, 500
    %vm196 = vcmp.lt.s32.totalorder %v132, 500
    %vm197 = vcmp.lt.s32.totalorder %v133, 500
    %vm198 = vcmp.lt.s32.totalorder %v134, 500
    %vm199 = vcmp.lt.s32.totalorder %v135, 500
    %vm200 = vcmp.lt.s32.totalorder %v136, 500
    %vm201 = vcmp.lt.s32.totalorder %v137, 500
    %vm202 = vcmp.lt.s32.totalorder %v138, 500
    %vm203 = vcmp.lt.s32.totalorder %v139, 500
    %vm204 = vcmp.lt.s32.totalorder %v140, 500
    %vm205 = vcmp.lt.s32.totalorder %v141, 500
    %vm206 = vcmp.lt.s32.totalorder %v142, 500
    %vm207 = vcmp.lt.s32.totalorder %v143, 500
    %vm208 = vcmp.lt.s32.totalorder %v144, 500
    %vm209 = vcmp.lt.s32.totalorder %v145, 500
    %vm210 = vcmp.lt.s32.totalorder %v146, 500
    %vm211 = vcmp.lt.s32.totalorder %v147, 500
    %vm212 = vcmp.lt.s32.totalorder %v148, 500
    %vm213 = vcmp.lt.s32.totalorder %v149, 500
    %vm214 = vcmp.lt.s32.totalorder %v150, 500
    %v215 = vpack.c.bf16 %v23, %v22
    %v216 = vpack.c.bf16 %v25, %v24
    %v217 = vpack.c.bf16 %v27, %v26
    %v218 = vpack.c.bf16 %v29, %v28
    %v219 = vpack.c.bf16 %v31, %v30
    %v220 = vpack.c.bf16 %v33, %v32
    %v221 = vpack.c.bf16 %v35, %v34
    %v222 = vpack.c.bf16 %v37, %v36
    %v223 = vpack.c.bf16 %v39, %v38
    %v224 = vpack.c.bf16 %v41, %v40
    %v225 = vpack.c.bf16 %v43, %v42
    %v226 = vpack.c.bf16 %v45, %v44
    %v227 = vpack.c.bf16 %v47, %v46
    %v228 = vpack.c.bf16 %v49, %v48
    %v229 = vpack.c.bf16 %v51, %v50
    %v230 = vpack.c.bf16 %v53, %v52
    %v231 = vpack.c.bf16 %v55, %v54
    %v232 = vpack.c.bf16 %v57, %v56
    %v233 = vpack.c.bf16 %v59, %v58
    %v234 = vpack.c.bf16 %v61, %v60
    %v235 = vpack.c.bf16 %v63, %v62
    %v236 = vpack.c.bf16 %v65, %v64
    %v237 = vpack.c.bf16 %v67, %v66
    %v238 = vpack.c.bf16 %v69, %v68
    %v239 = vpack.c.bf16 %v71, %v70
    %v240 = vpack.c.bf16 %v73, %v72
    %v241 = vpack.c.bf16 %v75, %v74
    %v242 = vpack.c.bf16 %v77, %v76
    %v243 = vpack.c.bf16 %v79, %v78
    %v244 = vpack.c.bf16 %v81, %v80
    %v245 = vpack.c.bf16 %v83, %v82
    %v246 = vpack.c.bf16 %v85, %v84
    %v247 = vld [vmem:[%s1] sm:$0xff]
    %v248 = vld [vmem:[%s1 + $0x8] sm:$0xff]
    %v249 = vld [vmem:[%s1 + $0x10] sm:$0xff]
    %v250 = vld [vmem:[%s1 + $0x18] sm:$0xff]
    %v251 = vld [vmem:[%s1 + $0x20] sm:$0xff]
    %v252 = vld [vmem:[%s1 + $0x28] sm:$0xff]
    %v253 = vld [vmem:[%s1 + $0x30] sm:$0xff]
    %v254 = vld [vmem:[%s1 + $0x38] sm:$0xff]
    %v263 = vunpack.c.l.b16 %v247
    %v264 = vunpack.c.h.b16 %v247
    %v265 = vunpack.c.l.b16 %v248
    %v266 = vunpack.c.h.b16 %v248
    %v267 = vunpack.c.l.b16 %v249
    %v268 = vunpack.c.h.b16 %v249
    %v269 = vunpack.c.l.b16 %v250
    %v270 = vunpack.c.h.b16 %v250
    %v271 = vunpack.c.l.b16 %v251
    %v272 = vunpack.c.h.b16 %v251
    %v273 = vunpack.c.l.b16 %v252
    %v274 = vunpack.c.h.b16 %v252
    %v275 = vunpack.c.l.b16 %v253
    %v276 = vunpack.c.h.b16 %v253
    %v277 = vunpack.c.l.b16 %v254
    %v278 = vunpack.c.h.b16 %v254
    %v279 = vpack.c.b16 %v265, %v263
    %v280 = vpack.c.b16 %v266, %v264
    %v281 = vpack.c.b16 %v269, %v267
    %v282 = vpack.c.b16 %v270, %v268
    %v283 = vpack.c.b16 %v273, %v271
    %v284 = vpack.c.b16 %v274, %v272
    %v285 = vpack.c.b16 %v277, %v275
    %v286 = vpack.c.b16 %v278, %v276
    %vm295 = vcmask 523264
    %v297 = vsel %vm295, %v215, 0
    %v300 = vsel %vm295, %v216, 0
    %v303 = vsel %vm295, %v217, 0
    %v306 = vsel %vm295, %v218, 0
    %v309 = vsel %vm295, %v219, 0
    %v312 = vsel %vm295, %v220, 0
    %v315 = vsel %vm295, %v221, 0
    %v318 = vsel %vm295, %v222, 0
    %v321 = vsel %vm295, %v223, 0
    %v324 = vsel %vm295, %v224, 0
    %v327 = vsel %vm295, %v225, 0
    %v330 = vsel %vm295, %v226, 0
    %v333 = vsel %vm295, %v227, 0
    %v336 = vsel %vm295, %v228, 0
    %v339 = vsel %vm295, %v229, 0
    %v342 = vsel %vm295, %v230, 0
    %v345 = vsel %vm295, %v231, 0
    %v348 = vsel %vm295, %v232, 0
    %v351 = vsel %vm295, %v233, 0
    %v354 = vsel %vm295, %v234, 0
    %v357 = vsel %vm295, %v235, 0
    %v360 = vsel %vm295, %v236, 0
    %v363 = vsel %vm295, %v237, 0
    %v366 = vsel %vm295, %v238, 0
    %v369 = vsel %vm295, %v239, 0
    %v372 = vsel %vm295, %v240, 0
    %v375 = vsel %vm295, %v241, 0
    %v378 = vsel %vm295, %v242, 0
    %v381 = vsel %vm295, %v243, 0
    %v384 = vsel %vm295, %v244, 0
    %v387 = vsel %vm295, %v245, 0
    %v390 = vsel %vm295, %v246, 0
    %392 = vmatpush.bf16.msra.mxu0 0
    %393 = vmatpush.bf16.msra.mxu0 0
    %394 = vmatpush.bf16.msra.mxu0 0
    %395 = vmatpush.bf16.msra.mxu0 0
    %396 = vmatpush.bf16.msra.mxu0 %v285
    %397 = vmatpush.bf16.msra.mxu0 %v283
    %398 = vmatpush.bf16.msra.mxu0 %v281
    %399 = vmatpush.bf16.msra.mxu0 %v279
    %400 = vmatmul.bf16.gmra.mxu0 %v297
    %v401 = vpop.f32.mrf.mxu0
    %v402 = vadd.f32 0.0, %v401
    %v403 = vpop.f32.mrf.mxu0
    %v404 = vadd.f32 0.0, %v403
    %405 = vmatmul.bf16.gmra.mxu0 %v300
    %v406 = vpop.f32.mrf.mxu0
    %v407 = vadd.f32 0.0, %v406
    %v408 = vpop.f32.mrf.mxu0
    %v409 = vadd.f32 0.0, %v408
    %410 = vmatmul.bf16.gmra.mxu0 %v303
    %v411 = vpop.f32.mrf.mxu0
    %v412 = vadd.f32 0.0, %v411
    %v413 = vpop.f32.mrf.mxu0
    %v414 = vadd.f32 0.0, %v413
    %415 = vmatmul.bf16.gmra.mxu0 %v306
    %v416 = vpop.f32.mrf.mxu0
    %v417 = vadd.f32 0.0, %v416
    %v418 = vpop.f32.mrf.mxu0
    %v419 = vadd.f32 0.0, %v418
    %420 = vmatmul.bf16.gmra.mxu0 %v309
    %v421 = vpop.f32.mrf.mxu0
    %v422 = vadd.f32 0.0, %v421
    %v423 = vpop.f32.mrf.mxu0
    %v424 = vadd.f32 0.0, %v423
    %425 = vmatmul.bf16.gmra.mxu0 %v312
    %v426 = vpop.f32.mrf.mxu0
    %v427 = vadd.f32 0.0, %v426
    %v428 = vpop.f32.mrf.mxu0
    %v429 = vadd.f32 0.0, %v428
    %430 = vmatmul.bf16.gmra.mxu0 %v315
    %v431 = vpop.f32.mrf.mxu0
    %v432 = vadd.f32 0.0, %v431
    %v433 = vpop.f32.mrf.mxu0
    %v434 = vadd.f32 0.0, %v433
    %435 = vmatmul.bf16.gmra.mxu0 %v318
    %v436 = vpop.f32.mrf.mxu0
    %v437 = vadd.f32 0.0, %v436
    %v438 = vpop.f32.mrf.mxu0
    %v439 = vadd.f32 0.0, %v438
    %440 = vmatmul.bf16.gmra.mxu0 %v321
    %v441 = vpop.f32.mrf.mxu0
    %v442 = vadd.f32 0.0, %v441
    %v443 = vpop.f32.mrf.mxu0
    %v444 = vadd.f32 0.0, %v443
    %445 = vmatmul.bf16.gmra.mxu0 %v324
    %v446 = vpop.f32.mrf.mxu0
    %v447 = vadd.f32 0.0, %v446
    %v448 = vpop.f32.mrf.mxu0
    %v449 = vadd.f32 0.0, %v448
    %450 = vmatmul.bf16.gmra.mxu0 %v327
    %v451 = vpop.f32.mrf.mxu0
    %v452 = vadd.f32 0.0, %v451
    %v453 = vpop.f32.mrf.mxu0
    %v454 = vadd.f32 0.0, %v453
    %455 = vmatmul.bf16.gmra.mxu0 %v330
    %v456 = vpop.f32.mrf.mxu0
    %v457 = vadd.f32 0.0, %v456
    %v458 = vpop.f32.mrf.mxu0
    %v459 = vadd.f32 0.0, %v458
    %460 = vmatmul.bf16.gmra.mxu0 %v333
    %v461 = vpop.f32.mrf.mxu0
    %v462 = vadd.f32 0.0, %v461
    %v463 = vpop.f32.mrf.mxu0
    %v464 = vadd.f32 0.0, %v463
    %465 = vmatmul.bf16.gmra.mxu0 %v336
    %v466 = vpop.f32.mrf.mxu0
    %v467 = vadd.f32 0.0, %v466
    %v468 = vpop.f32.mrf.mxu0
    %v469 = vadd.f32 0.0, %v468
    %470 = vmatmul.bf16.gmra.mxu0 %v339
    %v471 = vpop.f32.mrf.mxu0
    %v472 = vadd.f32 0.0, %v471
    %v473 = vpop.f32.mrf.mxu0
    %v474 = vadd.f32 0.0, %v473
    %475 = vmatmul.bf16.gmra.mxu0 %v342
    %v476 = vpop.f32.mrf.mxu0
    %v477 = vadd.f32 0.0, %v476
    %v478 = vpop.f32.mrf.mxu0
    %v479 = vadd.f32 0.0, %v478
    %480 = vmatmul.bf16.gmra.mxu0 %v345
    %v481 = vpop.f32.mrf.mxu0
    %v482 = vadd.f32 0.0, %v481
    %v483 = vpop.f32.mrf.mxu0
    %v484 = vadd.f32 0.0, %v483
    %485 = vmatmul.bf16.gmra.mxu0 %v348
    %v486 = vpop.f32.mrf.mxu0
    %v487 = vadd.f32 0.0, %v486
    %v488 = vpop.f32.mrf.mxu0
    %v489 = vadd.f32 0.0, %v488
    %490 = vmatmul.bf16.gmra.mxu0 %v351
    %v491 = vpop.f32.mrf.mxu0
    %v492 = vadd.f32 0.0, %v491
    %v493 = vpop.f32.mrf.mxu0
    %v494 = vadd.f32 0.0, %v493
    %495 = vmatmul.bf16.gmra.mxu0 %v354
    %v496 = vpop.f32.mrf.mxu0
    %v497 = vadd.f32 0.0, %v496
    %v498 = vpop.f32.mrf.mxu0
    %v499 = vadd.f32 0.0, %v498
    %500 = vmatmul.bf16.gmra.mxu0 %v357
    %v501 = vpop.f32.mrf.mxu0
    %v502 = vadd.f32 0.0, %v501
    %v503 = vpop.f32.mrf.mxu0
    %v504 = vadd.f32 0.0, %v503
    %505 = vmatmul.bf16.gmra.mxu0 %v360
    %v506 = vpop.f32.mrf.mxu0
    %v507 = vadd.f32 0.0, %v506
    %v508 = vpop.f32.mrf.mxu0
    %v509 = vadd.f32 0.0, %v508
    %510 = vmatmul.bf16.gmra.mxu0 %v363
    %v511 = vpop.f32.mrf.mxu0
    %v512 = vadd.f32 0.0, %v511
    %v513 = vpop.f32.mrf.mxu0
    %v514 = vadd.f32 0.0, %v513
    %515 = vmatmul.bf16.gmra.mxu0 %v366
    %v516 = vpop.f32.mrf.mxu0
    %v517 = vadd.f32 0.0, %v516
    %v518 = vpop.f32.mrf.mxu0
    %v519 = vadd.f32 0.0, %v518
    %520 = vmatmul.bf16.gmra.mxu0 %v369
    %v521 = vpop.f32.mrf.mxu0
    %v522 = vadd.f32 0.0, %v521
    %v523 = vpop.f32.mrf.mxu0
    %v524 = vadd.f32 0.0, %v523
    %525 = vmatmul.bf16.gmra.mxu0 %v372
    %v526 = vpop.f32.mrf.mxu0
    %v527 = vadd.f32 0.0, %v526
    %v528 = vpop.f32.mrf.mxu0
    %v529 = vadd.f32 0.0, %v528
    %530 = vmatmul.bf16.gmra.mxu0 %v375
    %v531 = vpop.f32.mrf.mxu0
    %v532 = vadd.f32 0.0, %v531
    %v533 = vpop.f32.mrf.mxu0
    %v534 = vadd.f32 0.0, %v533
    %535 = vmatmul.bf16.gmra.mxu0 %v378
    %v536 = vpop.f32.mrf.mxu0
    %v537 = vadd.f32 0.0, %v536
    %v538 = vpop.f32.mrf.mxu0
    %v539 = vadd.f32 0.0, %v538
    %540 = vmatmul.bf16.gmra.mxu0 %v381
    %v541 = vpop.f32.mrf.mxu0
    %v542 = vadd.f32 0.0, %v541
    %v543 = vpop.f32.mrf.mxu0
    %v544 = vadd.f32 0.0, %v543
    %545 = vmatmul.bf16.gmra.mxu0 %v384
    %v546 = vpop.f32.mrf.mxu0
    %v547 = vadd.f32 0.0, %v546
    %v548 = vpop.f32.mrf.mxu0
    %v549 = vadd.f32 0.0, %v548
    %550 = vmatmul.bf16.gmra.mxu0 %v387
    %v551 = vpop.f32.mrf.mxu0
    %v552 = vadd.f32 0.0, %v551
    %v553 = vpop.f32.mrf.mxu0
    %v554 = vadd.f32 0.0, %v553
    %555 = vmatmul.bf16.gmra.mxu0 %v390
    %v556 = vpop.f32.mrf.mxu0
    %v557 = vadd.f32 0.0, %v556
    %v558 = vpop.f32.mrf.mxu0
    %v559 = vadd.f32 0.0, %v558
    %560 = vdwg.mxu0
    %561 = vmatpush.bf16.msra.mxu0 0
    %562 = vmatpush.bf16.msra.mxu0 0
    %563 = vmatpush.bf16.msra.mxu0 0
    %564 = vmatpush.bf16.msra.mxu0 0
    %565 = vmatpush.bf16.msra.mxu0 %v286
    %566 = vmatpush.bf16.msra.mxu0 %v284
    %567 = vmatpush.bf16.msra.mxu0 %v282
    %568 = vmatpush.bf16.msra.mxu0 %v280
    %569 = vmatmul.bf16.gmra.mxu0 %v297
    %v570 = vpop.f32.mrf.mxu0
    %v571 = vadd.f32 0.0, %v570
    %v572 = vpop.f32.mrf.mxu0
    %v573 = vadd.f32 0.0, %v572
    %574 = vmatmul.bf16.gmra.mxu0 %v300
    %v575 = vpop.f32.mrf.mxu0
    %v576 = vadd.f32 0.0, %v575
    %v577 = vpop.f32.mrf.mxu0
    %v578 = vadd.f32 0.0, %v577
    %579 = vmatmul.bf16.gmra.mxu0 %v303
    %v580 = vpop.f32.mrf.mxu0
    %v581 = vadd.f32 0.0, %v580
    %v582 = vpop.f32.mrf.mxu0
    %v583 = vadd.f32 0.0, %v582
    %584 = vmatmul.bf16.gmra.mxu0 %v306
    %v585 = vpop.f32.mrf.mxu0
    %v586 = vadd.f32 0.0, %v585
    %v587 = vpop.f32.mrf.mxu0
    %v588 = vadd.f32 0.0, %v587
    %589 = vmatmul.bf16.gmra.mxu0 %v309
    %v590 = vpop.f32.mrf.mxu0
    %v591 = vadd.f32 0.0, %v590
    %v592 = vpop.f32.mrf.mxu0
    %v593 = vadd.f32 0.0, %v592
    %594 = vmatmul.bf16.gmra.mxu0 %v312
    %v595 = vpop.f32.mrf.mxu0
    %v596 = vadd.f32 0.0, %v595
    %v597 = vpop.f32.mrf.mxu0
    %v598 = vadd.f32 0.0, %v597
    %599 = vmatmul.bf16.gmra.mxu0 %v315
    %v600 = vpop.f32.mrf.mxu0
    %v601 = vadd.f32 0.0, %v600
    %v602 = vpop.f32.mrf.mxu0
    %v603 = vadd.f32 0.0, %v602
    %604 = vmatmul.bf16.gmra.mxu0 %v318
    %v605 = vpop.f32.mrf.mxu0
    %v606 = vadd.f32 0.0, %v605
    %v607 = vpop.f32.mrf.mxu0
    %v608 = vadd.f32 0.0, %v607
    %609 = vmatmul.bf16.gmra.mxu0 %v321
    %v610 = vpop.f32.mrf.mxu0
    %v611 = vadd.f32 0.0, %v610
    %v612 = vpop.f32.mrf.mxu0
    %v613 = vadd.f32 0.0, %v612
    %614 = vmatmul.bf16.gmra.mxu0 %v324
    %v615 = vpop.f32.mrf.mxu0
    %v616 = vadd.f32 0.0, %v615
    %v617 = vpop.f32.mrf.mxu0
    %v618 = vadd.f32 0.0, %v617
    %619 = vmatmul.bf16.gmra.mxu0 %v327
    %v620 = vpop.f32.mrf.mxu0
    %v621 = vadd.f32 0.0, %v620
    %v622 = vpop.f32.mrf.mxu0
    %v623 = vadd.f32 0.0, %v622
    %624 = vmatmul.bf16.gmra.mxu0 %v330
    %v625 = vpop.f32.mrf.mxu0
    %v626 = vadd.f32 0.0, %v625
    %v627 = vpop.f32.mrf.mxu0
    %v628 = vadd.f32 0.0, %v627
    %629 = vmatmul.bf16.gmra.mxu0 %v333
    %v630 = vpop.f32.mrf.mxu0
    %v631 = vadd.f32 0.0, %v630
    %v632 = vpop.f32.mrf.mxu0
    %v633 = vadd.f32 0.0, %v632
    %634 = vmatmul.bf16.gmra.mxu0 %v336
    %v635 = vpop.f32.mrf.mxu0
    %v636 = vadd.f32 0.0, %v635
    %v637 = vpop.f32.mrf.mxu0
    %v638 = vadd.f32 0.0, %v637
    %639 = vmatmul.bf16.gmra.mxu0 %v339
    %v640 = vpop.f32.mrf.mxu0
    %v641 = vadd.f32 0.0, %v640
    %v642 = vpop.f32.mrf.mxu0
    %v643 = vadd.f32 0.0, %v642
    %644 = vmatmul.bf16.gmra.mxu0 %v342
    %v645 = vpop.f32.mrf.mxu0
    %v646 = vadd.f32 0.0, %v645
    %v647 = vpop.f32.mrf.mxu0
    %v648 = vadd.f32 0.0, %v647
    %649 = vmatmul.bf16.gmra.mxu0 %v345
    %v650 = vpop.f32.mrf.mxu0
    %v651 = vadd.f32 0.0, %v650
    %v652 = vpop.f32.mrf.mxu0
    %v653 = vadd.f32 0.0, %v652
    %654 = vmatmul.bf16.gmra.mxu0 %v348
    %v655 = vpop.f32.mrf.mxu0
    %v656 = vadd.f32 0.0, %v655
    %v657 = vpop.f32.mrf.mxu0
    %v658 = vadd.f32 0.0, %v657
    %659 = vmatmul.bf16.gmra.mxu0 %v351
    %v660 = vpop.f32.mrf.mxu0
    %v661 = vadd.f32 0.0, %v660
    %v662 = vpop.f32.mrf.mxu0
    %v663 = vadd.f32 0.0, %v662
    %664 = vmatmul.bf16.gmra.mxu0 %v354
    %v665 = vpop.f32.mrf.mxu0
    %v666 = vadd.f32 0.0, %v665
    %v667 = vpop.f32.mrf.mxu0
    %v668 = vadd.f32 0.0, %v667
    %669 = vmatmul.bf16.gmra.mxu0 %v357
    %v670 = vpop.f32.mrf.mxu0
    %v671 = vadd.f32 0.0, %v670
    %v672 = vpop.f32.mrf.mxu0
    %v673 = vadd.f32 0.0, %v672
    %674 = vmatmul.bf16.gmra.mxu0 %v360
    %v675 = vpop.f32.mrf.mxu0
    %v676 = vadd.f32 0.0, %v675
    %v677 = vpop.f32.mrf.mxu0
    %v678 = vadd.f32 0.0, %v677
    %679 = vmatmul.bf16.gmra.mxu0 %v363
    %v680 = vpop.f32.mrf.mxu0
    %v681 = vadd.f32 0.0, %v680
    %v682 = vpop.f32.mrf.mxu0
    %v683 = vadd.f32 0.0, %v682
    %684 = vmatmul.bf16.gmra.mxu0 %v366
    %v685 = vpop.f32.mrf.mxu0
    %v686 = vadd.f32 0.0, %v685
    %v687 = vpop.f32.mrf.mxu0
    %v688 = vadd.f32 0.0, %v687
    %689 = vmatmul.bf16.gmra.mxu0 %v369
    %v690 = vpop.f32.mrf.mxu0
    %v691 = vadd.f32 0.0, %v690
    %v692 = vpop.f32.mrf.mxu0
    %v693 = vadd.f32 0.0, %v692
    %694 = vmatmul.bf16.gmra.mxu0 %v372
    %v695 = vpop.f32.mrf.mxu0
    %v696 = vadd.f32 0.0, %v695
    %v697 = vpop.f32.mrf.mxu0
    %v698 = vadd.f32 0.0, %v697
    %699 = vmatmul.bf16.gmra.mxu0 %v375
    %v700 = vpop.f32.mrf.mxu0
    %v701 = vadd.f32 0.0, %v700
    %v702 = vpop.f32.mrf.mxu0
    %v703 = vadd.f32 0.0, %v702
    %704 = vmatmul.bf16.gmra.mxu0 %v378
    %v705 = vpop.f32.mrf.mxu0
    %v706 = vadd.f32 0.0, %v705
    %v707 = vpop.f32.mrf.mxu0
    %v708 = vadd.f32 0.0, %v707
    %709 = vmatmul.bf16.gmra.mxu0 %v381
    %v710 = vpop.f32.mrf.mxu0
    %v711 = vadd.f32 0.0, %v710
    %v712 = vpop.f32.mrf.mxu0
    %v713 = vadd.f32 0.0, %v712
    %714 = vmatmul.bf16.gmra.mxu0 %v384
    %v715 = vpop.f32.mrf.mxu0
    %v716 = vadd.f32 0.0, %v715
    %v717 = vpop.f32.mrf.mxu0
    %v718 = vadd.f32 0.0, %v717
    %719 = vmatmul.bf16.gmra.mxu0 %v387
    %v720 = vpop.f32.mrf.mxu0
    %v721 = vadd.f32 0.0, %v720
    %v722 = vpop.f32.mrf.mxu0
    %v723 = vadd.f32 0.0, %v722
    %724 = vmatmul.bf16.gmra.mxu0 %v390
    %v725 = vpop.f32.mrf.mxu0
    %v726 = vadd.f32 0.0, %v725
    %v727 = vpop.f32.mrf.mxu0
    %v728 = vadd.f32 0.0, %v727
    %729 = vdwg.mxu0
    %v730 = vadd.f32 %v402, %v404
    %v731 = vadd.f32 %v730, %v407
    %v732 = vadd.f32 %v731, %v409
    %v733 = vadd.f32 %v732, %v412
    %v734 = vadd.f32 %v733, %v414
    %v735 = vadd.f32 %v734, %v417
    %v736 = vadd.f32 %v735, %v419
    %v737 = vadd.f32 %v736, %v422
    %v738 = vadd.f32 %v737, %v424
    %v739 = vadd.f32 %v738, %v427
    %v740 = vadd.f32 %v739, %v429
    %v741 = vadd.f32 %v740, %v432
    %v742 = vadd.f32 %v741, %v434
    %v743 = vadd.f32 %v742, %v437
    %v744 = vadd.f32 %v743, %v439
    %v745 = vadd.f32 %v744, %v442
    %v746 = vadd.f32 %v745, %v444
    %v747 = vadd.f32 %v746, %v447
    %v748 = vadd.f32 %v747, %v449
    %v749 = vadd.f32 %v748, %v452
    %v750 = vadd.f32 %v749, %v454
    %v751 = vadd.f32 %v750, %v457
    %v752 = vadd.f32 %v751, %v459
    %v753 = vadd.f32 %v752, %v462
    %v754 = vadd.f32 %v753, %v464
    %v755 = vadd.f32 %v754, %v467
    %v756 = vadd.f32 %v755, %v469
    %v757 = vadd.f32 %v756, %v472
    %v758 = vadd.f32 %v757, %v474
    %v759 = vadd.f32 %v758, %v477
    %v760 = vadd.f32 %v759, %v479
    %v761 = vadd.f32 %v760, %v482
    %v762 = vadd.f32 %v761, %v484
    %v763 = vadd.f32 %v762, %v487
    %v764 = vadd.f32 %v763, %v489
    %v765 = vadd.f32 %v764, %v492
    %v766 = vadd.f32 %v765, %v494
    %v767 = vadd.f32 %v766, %v497
    %v768 = vadd.f32 %v767, %v499
    %v769 = vadd.f32 %v768, %v502
    %v770 = vadd.f32 %v769, %v504
    %v771 = vadd.f32 %v770, %v507
    %v772 = vadd.f32 %v771, %v509
    %v773 = vadd.f32 %v772, %v512
    %v774 = vadd.f32 %v773, %v514
    %v775 = vadd.f32 %v774, %v517
    %v776 = vadd.f32 %v775, %v519
    %v777 = vadd.f32 %v776, %v522
    %v778 = vadd.f32 %v777, %v524
    %v779 = vadd.f32 %v778, %v527
    %v780 = vadd.f32 %v779, %v529
    %v781 = vadd.f32 %v780, %v532
    %v782 = vadd.f32 %v781, %v534
    %v783 = vadd.f32 %v782, %v537
    %v784 = vadd.f32 %v783, %v539
    %v785 = vadd.f32 %v784, %v542
    %v786 = vadd.f32 %v785, %v544
    %v787 = vadd.f32 %v786, %v547
    %v788 = vadd.f32 %v787, %v549
    %v789 = vadd.f32 %v788, %v552
    %v790 = vadd.f32 %v789, %v554
    %v791 = vadd.f32 %v790, %v557
    %v792 = vadd.f32 %v791, %v559
    %v793 = vrot.slane %v792, 4
    %v794 = vadd.f32 %v792, %v793
    %v795 = vrot.slane %v794, 2
    %v796 = vadd.f32 %v794, %v795
    %v797 = vrot.slane %v796, 1
    %v798 = vadd.f32 %v796, %v797
    %v799 = vadd.f32 %v571, %v573
    %v800 = vadd.f32 %v799, %v576
    %v801 = vadd.f32 %v800, %v578
    %v802 = vadd.f32 %v801, %v581
    %v803 = vadd.f32 %v802, %v583
    %v804 = vadd.f32 %v803, %v586
    %v805 = vadd.f32 %v804, %v588
    %v806 = vadd.f32 %v805, %v591
    %v807 = vadd.f32 %v806, %v593
    %v808 = vadd.f32 %v807, %v596
    %v809 = vadd.f32 %v808, %v598
    %v810 = vadd.f32 %v809, %v601
    %v811 = vadd.f32 %v810, %v603
    %v812 = vadd.f32 %v811, %v606
    %v813 = vadd.f32 %v812, %v608
    %v814 = vadd.f32 %v813, %v611
    %v815 = vadd.f32 %v814, %v613
    %v816 = vadd.f32 %v815, %v616
    %v817 = vadd.f32 %v816, %v618
    %v818 = vadd.f32 %v817, %v621
    %v819 = vadd.f32 %v818, %v623
    %v820 = vadd.f32 %v819, %v626
    %v821 = vadd.f32 %v820, %v628
    %v822 = vadd.f32 %v821, %v631
    %v823 = vadd.f32 %v822, %v633
    %v824 = vadd.f32 %v823, %v636
    %v825 = vadd.f32 %v824, %v638
    %v826 = vadd.f32 %v825, %v641
    %v827 = vadd.f32 %v826, %v643
    %v828 = vadd.f32 %v827, %v646
    %v829 = vadd.f32 %v828, %v648
    %v830 = vadd.f32 %v829, %v651
    %v831 = vadd.f32 %v830, %v653
    %v832 = vadd.f32 %v831, %v656
    %v833 = vadd.f32 %v832, %v658
    %v834 = vadd.f32 %v833, %v661
    %v835 = vadd.f32 %v834, %v663
    %v836 = vadd.f32 %v835, %v666
    %v837 = vadd.f32 %v836, %v668
    %v838 = vadd.f32 %v837, %v671
    %v839 = vadd.f32 %v838, %v673
    %v840 = vadd.f32 %v839, %v676
    %v841 = vadd.f32 %v840, %v678
    %v842 = vadd.f32 %v841, %v681
    %v843 = vadd.f32 %v842, %v683
    %v844 = vadd.f32 %v843, %v686
    %v845 = vadd.f32 %v844, %v688
    %v846 = vadd.f32 %v845, %v691
    %v847 = vadd.f32 %v846, %v693
    %v848 = vadd.f32 %v847, %v696
    %v849 = vadd.f32 %v848, %v698
    %v850 = vadd.f32 %v849, %v701
    %v851 = vadd.f32 %v850, %v703
    %v852 = vadd.f32 %v851, %v706
    %v853 = vadd.f32 %v852, %v708
    %v854 = vadd.f32 %v853, %v711
    %v855 = vadd.f32 %v854, %v713
    %v856 = vadd.f32 %v855, %v716
    %v857 = vadd.f32 %v856, %v718
    %v858 = vadd.f32 %v857, %v721
    %v859 = vadd.f32 %v858, %v723
    %v860 = vadd.f32 %v859, %v726
    %v861 = vadd.f32 %v860, %v728
    %v862 = vrot.slane %v861, 4
    %v863 = vadd.f32 %v861, %v862
    %v864 = vrot.slane %v863, 2
    %v865 = vadd.f32 %v863, %v864
    %v866 = vrot.slane %v865, 1
    %v867 = vadd.f32 %v865, %v866
    %v868 = vmul.f32 %v402, %v402
    %v869 = vmul.f32 %v571, %v571
    %v870 = vmul.f32 %v404, %v404
    %v871 = vmul.f32 %v573, %v573
    %v872 = vmul.f32 %v407, %v407
    %v873 = vmul.f32 %v576, %v576
    %v874 = vmul.f32 %v409, %v409
    %v875 = vmul.f32 %v578, %v578
    %v876 = vmul.f32 %v412, %v412
    %v877 = vmul.f32 %v581, %v581
    %v878 = vmul.f32 %v414, %v414
    %v879 = vmul.f32 %v583, %v583
    %v880 = vmul.f32 %v417, %v417
    %v881 = vmul.f32 %v586, %v586
    %v882 = vmul.f32 %v419, %v419
    %v883 = vmul.f32 %v588, %v588
    %v884 = vmul.f32 %v422, %v422
    %v885 = vmul.f32 %v591, %v591
    %v886 = vmul.f32 %v424, %v424
    %v887 = vmul.f32 %v593, %v593
    %v888 = vmul.f32 %v427, %v427
    %v889 = vmul.f32 %v596, %v596
    %v890 = vmul.f32 %v429, %v429
    %v891 = vmul.f32 %v598, %v598
    %v892 = vmul.f32 %v432, %v432
    %v893 = vmul.f32 %v601, %v601
    %v894 = vmul.f32 %v434, %v434
    %v895 = vmul.f32 %v603, %v603
    %v896 = vmul.f32 %v437, %v437
    %v897 = vmul.f32 %v606, %v606
    %v898 = vmul.f32 %v439, %v439
    %v899 = vmul.f32 %v608, %v608
    %v900 = vmul.f32 %v442, %v442
    %v901 = vmul.f32 %v611, %v611
    %v902 = vmul.f32 %v444, %v444
    %v903 = vmul.f32 %v613, %v613
    %v904 = vmul.f32 %v447, %v447
    %v905 = vmul.f32 %v616, %v616
    %v906 = vmul.f32 %v449, %v449
    %v907 = vmul.f32 %v618, %v618
    %v908 = vmul.f32 %v452, %v452
    %v909 = vmul.f32 %v621, %v621
    %v910 = vmul.f32 %v454, %v454
    %v911 = vmul.f32 %v623, %v623
    %v912 = vmul.f32 %v457, %v457
    %v913 = vmul.f32 %v626, %v626
    %v914 = vmul.f32 %v459, %v459
    %v915 = vmul.f32 %v628, %v628
    %v916 = vmul.f32 %v462, %v462
    %v917 = vmul.f32 %v631, %v631
    %v918 = vmul.f32 %v464, %v464
    %v919 = vmul.f32 %v633, %v633
    %v920 = vmul.f32 %v467, %v467
    %v921 = vmul.f32 %v636, %v636
    %v922 = vmul.f32 %v469, %v469
    %v923 = vmul.f32 %v638, %v638
    %v924 = vmul.f32 %v472, %v472
    %v925 = vmul.f32 %v641, %v641
    %v926 = vmul.f32 %v474, %v474
    %v927 = vmul.f32 %v643, %v643
    %v928 = vmul.f32 %v477, %v477
    %v929 = vmul.f32 %v646, %v646
    %v930 = vmul.f32 %v479, %v479
    %v931 = vmul.f32 %v648, %v648
    %v932 = vmul.f32 %v482, %v482
    %v933 = vmul.f32 %v651, %v651
    %v934 = vmul.f32 %v484, %v484
    %v935 = vmul.f32 %v653, %v653
    %v936 = vmul.f32 %v487, %v487
    %v937 = vmul.f32 %v656, %v656
    %v938 = vmul.f32 %v489, %v489
    %v939 = vmul.f32 %v658, %v658
    %v940 = vmul.f32 %v492, %v492
    %v941 = vmul.f32 %v661, %v661
    %v942 = vmul.f32 %v494, %v494
    %v943 = vmul.f32 %v663, %v663
    %v944 = vmul.f32 %v497, %v497
    %v945 = vmul.f32 %v666, %v666
    %v946 = vmul.f32 %v499, %v499
    %v947 = vmul.f32 %v668, %v668
    %v948 = vmul.f32 %v502, %v502
    %v949 = vmul.f32 %v671, %v671
    %v950 = vmul.f32 %v504, %v504
    %v951 = vmul.f32 %v673, %v673
    %v952 = vmul.f32 %v507, %v507
    %v953 = vmul.f32 %v676, %v676
    %v954 = vmul.f32 %v509, %v509
    %v955 = vmul.f32 %v678, %v678
    %v956 = vmul.f32 %v512, %v512
    %v957 = vmul.f32 %v681, %v681
    %v958 = vmul.f32 %v514, %v514
    %v959 = vmul.f32 %v683, %v683
    %v960 = vmul.f32 %v517, %v517
    %v961 = vmul.f32 %v686, %v686
    %v962 = vmul.f32 %v519, %v519
    %v963 = vmul.f32 %v688, %v688
    %v964 = vmul.f32 %v522, %v522
    %v965 = vmul.f32 %v691, %v691
    %v966 = vmul.f32 %v524, %v524
    %v967 = vmul.f32 %v693, %v693
    %v968 = vmul.f32 %v527, %v527
    %v969 = vmul.f32 %v696, %v696
    %v970 = vmul.f32 %v529, %v529
    %v971 = vmul.f32 %v698, %v698
    %v972 = vmul.f32 %v532, %v532
    %v973 = vmul.f32 %v701, %v701
    %v974 = vmul.f32 %v534, %v534
    %v975 = vmul.f32 %v703, %v703
    %v976 = vmul.f32 %v537, %v537
    %v977 = vmul.f32 %v706, %v706
    %v978 = vmul.f32 %v539, %v539
    %v979 = vmul.f32 %v708, %v708
    %v980 = vmul.f32 %v542, %v542
    %v981 = vmul.f32 %v711, %v711
    %v982 = vmul.f32 %v544, %v544
    %v983 = vmul.f32 %v713, %v713
    %v984 = vmul.f32 %v547, %v547
    %v985 = vmul.f32 %v716, %v716
    %v986 = vmul.f32 %v549, %v549
    %v987 = vmul.f32 %v718, %v718
    %v988 = vmul.f32 %v552, %v552
    %v989 = vmul.f32 %v721, %v721
    %v990 = vmul.f32 %v554, %v554
    %v991 = vmul.f32 %v723, %v723
    %v992 = vmul.f32 %v557, %v557
    %v993 = vmul.f32 %v726, %v726
    %v994 = vmul.f32 %v559, %v559
    %v995 = vmul.f32 %v728, %v728
    %v996 = vadd.f32 %v868, %v870
    %v997 = vadd.f32 %v996, %v872
    %v998 = vadd.f32 %v997, %v874
    %v999 = vadd.f32 %v998, %v876
    %v1000 = vadd.f32 %v999, %v878
    %v1001 = vadd.f32 %v1000, %v880
    %v1002 = vadd.f32 %v1001, %v882
    %v1003 = vadd.f32 %v1002, %v884
    %v1004 = vadd.f32 %v1003, %v886
    %v1005 = vadd.f32 %v1004, %v888
    %v1006 = vadd.f32 %v1005, %v890
    %v1007 = vadd.f32 %v1006, %v892
    %v1008 = vadd.f32 %v1007, %v894
    %v1009 = vadd.f32 %v1008, %v896
    %v1010 = vadd.f32 %v1009, %v898
    %v1011 = vadd.f32 %v1010, %v900
    %v1012 = vadd.f32 %v1011, %v902
    %v1013 = vadd.f32 %v1012, %v904
    %v1014 = vadd.f32 %v1013, %v906
    %v1015 = vadd.f32 %v1014, %v908
    %v1016 = vadd.f32 %v1015, %v910
    %v1017 = vadd.f32 %v1016, %v912
    %v1018 = vadd.f32 %v1017, %v914
    %v1019 = vadd.f32 %v1018, %v916
    %v1020 = vadd.f32 %v1019, %v918
    %v1021 = vadd.f32 %v1020, %v920
    %v1022 = vadd.f32 %v1021, %v922
    %v1023 = vadd.f32 %v1022, %v924
    %v1024 = vadd.f32 %v1023, %v926
    %v1025 = vadd.f32 %v1024, %v928
    %v1026 = vadd.f32 %v1025, %v930
    %v1027 = vadd.f32 %v1026, %v932
    %v1028 = vadd.f32 %v1027, %v934
    %v1029 = vadd.f32 %v1028, %v936
    %v1030 = vadd.f32 %v1029, %v938
    %v1031 = vadd.f32 %v1030, %v940
    %v1032 = vadd.f32 %v1031, %v942
    %v1033 = vadd.f32 %v1032, %v944
    %v1034 = vadd.f32 %v1033, %v946
    %v1035 = vadd.f32 %v1034, %v948
    %v1036 = vadd.f32 %v1035, %v950
    %v1037 = vadd.f32 %v1036, %v952
    %v1038 = vadd.f32 %v1037, %v954
    %v1039 = vadd.f32 %v1038, %v956
    %v1040 = vadd.f32 %v1039, %v958
    %v1041 = vadd.f32 %v1040, %v960
    %v1042 = vadd.f32 %v1041, %v962
    %v1043 = vadd.f32 %v1042, %v964
    %v1044 = vadd.f32 %v1043, %v966
    %v1045 = vadd.f32 %v1044, %v968
    %v1046 = vadd.f32 %v1045, %v970
    %v1047 = vadd.f32 %v1046, %v972
    %v1048 = vadd.f32 %v1047, %v974
    %v1049 = vadd.f32 %v1048, %v976
    %v1050 = vadd.f32 %v1049, %v978
    %v1051 = vadd.f32 %v1050, %v980
    %v1052 = vadd.f32 %v1051, %v982
    %v1053 = vadd.f32 %v1052, %v984
    %v1054 = vadd.f32 %v1053, %v986
    %v1055 = vadd.f32 %v1054, %v988
    %v1056 = vadd.f32 %v1055, %v990
    %v1057 = vadd.f32 %v1056, %v992
    %v1058 = vadd.f32 %v1057, %v994
    %v1059 = vrot.slane %v1058, 4
    %v1060 = vadd.f32 %v1058, %v1059
    %v1061 = vrot.slane %v1060, 2
    %v1062 = vadd.f32 %v1060, %v1061
    %v1063 = vrot.slane %v1062, 1
    %v1064 = vadd.f32 %v1062, %v1063
    %v1065 = vadd.f32 %v869, %v871
    %v1066 = vadd.f32 %v1065, %v873
    %v1067 = vadd.f32 %v1066, %v875
    %v1068 = vadd.f32 %v1067, %v877
    %v1069 = vadd.f32 %v1068, %v879
    %v1070 = vadd.f32 %v1069, %v881
    %v1071 = vadd.f32 %v1070, %v883
    %v1072 = vadd.f32 %v1071, %v885
    %v1073 = vadd.f32 %v1072, %v887
    %v1074 = vadd.f32 %v1073, %v889
    %v1075 = vadd.f32 %v1074, %v891
    %v1076 = vadd.f32 %v1075, %v893
    %v1077 = vadd.f32 %v1076, %v895
    %v1078 = vadd.f32 %v1077, %v897
    %v1079 = vadd.f32 %v1078, %v899
    %v1080 = vadd.f32 %v1079, %v901
    %v1081 = vadd.f32 %v1080, %v903
    %v1082 = vadd.f32 %v1081, %v905
    %v1083 = vadd.f32 %v1082, %v907
    %v1084 = vadd.f32 %v1083, %v909
    %v1085 = vadd.f32 %v1084, %v911
    %v1086 = vadd.f32 %v1085, %v913
    %v1087 = vadd.f32 %v1086, %v915
    %v1088 = vadd.f32 %v1087, %v917
    %v1089 = vadd.f32 %v1088, %v919
    %v1090 = vadd.f32 %v1089, %v921
    %v1091 = vadd.f32 %v1090, %v923
    %v1092 = vadd.f32 %v1091, %v925
    %v1093 = vadd.f32 %v1092, %v927
    %v1094 = vadd.f32 %v1093, %v929
    %v1095 = vadd.f32 %v1094, %v931
    %v1096 = vadd.f32 %v1095, %v933
    %v1097 = vadd.f32 %v1096, %v935
    %v1098 = vadd.f32 %v1097, %v937
    %v1099 = vadd.f32 %v1098, %v939
    %v1100 = vadd.f32 %v1099, %v941
    %v1101 = vadd.f32 %v1100, %v943
    %v1102 = vadd.f32 %v1101, %v945
    %v1103 = vadd.f32 %v1102, %v947
    %v1104 = vadd.f32 %v1103, %v949
    %v1105 = vadd.f32 %v1104, %v951
    %v1106 = vadd.f32 %v1105, %v953
    %v1107 = vadd.f32 %v1106, %v955
    %v1108 = vadd.f32 %v1107, %v957
    %v1109 = vadd.f32 %v1108, %v959
    %v1110 = vadd.f32 %v1109, %v961
    %v1111 = vadd.f32 %v1110, %v963
    %v1112 = vadd.f32 %v1111, %v965
    %v1113 = vadd.f32 %v1112, %v967
    %v1114 = vadd.f32 %v1113, %v969
    %v1115 = vadd.f32 %v1114, %v971
    %v1116 = vadd.f32 %v1115, %v973
    %v1117 = vadd.f32 %v1116, %v975
    %v1118 = vadd.f32 %v1117, %v977
    %v1119 = vadd.f32 %v1118, %v979
    %v1120 = vadd.f32 %v1119, %v981
    %v1121 = vadd.f32 %v1120, %v983
    %v1122 = vadd.f32 %v1121, %v985
    %v1123 = vadd.f32 %v1122, %v987
    %v1124 = vadd.f32 %v1123, %v989
    %v1125 = vadd.f32 %v1124, %v991
    %v1126 = vadd.f32 %v1125, %v993
    %v1127 = vadd.f32 %v1126, %v995
    %v1128 = vrot.slane %v1127, 4
    %v1129 = vadd.f32 %v1127, %v1128
    %v1130 = vrot.slane %v1129, 2
    %v1131 = vadd.f32 %v1129, %v1130
    %v1132 = vrot.slane %v1131, 1
    %v1133 = vadd.f32 %v1131, %v1132
    %v1134 = vmul.f32 %v798, 0.002
    %v1135 = vmul.f32 %v867, 0.002
    %v1136 = vmul.f32 %v1064, 0.002
    %v1137 = vmul.f32 %v1133, 0.002
    %v1138 = vmul.f32 %v1134, %v1134
    %v1139 = vmul.f32 %v1135, %v1135
    %v1140 = vsub.f32 %v1136, %v1138
    %v1141 = vsub.f32 %v1137, %v1139
    %v1142 = vmax.f32 %v1140, 0.0
    %v1143 = vmax.f32 %v1141, 0.0
    %v1144 = vadd.f32 %v1142, 1e-05
    %v1145 = vadd.f32 %v1143, 1e-05
    %v1146 = vrsqrt.pop %v1144
    %v1147 = vmul.f32 %v1146, %v1144
    %v1148 = vmul.f32 %v1147, %v1146
    %v1149 = vmul.f32 0.5, %v1148
    %v1150 = vsub.f32 1.5, %v1149
    %v1151 = vmul.f32 %v1146, %v1150
    %vm1152 = vweird.f32 %v1144
    %vm1153 = vweird.f32 %v1146
    %vm1154 = vmor %vm1152, %vm1153
    %v1155 = vsel %vm1154, %v1146, %v1151
    %v1156 = vrsqrt.pop %v1145
    %v1157 = vmul.f32 %v1156, %v1145
    %v1158 = vmul.f32 %v1157, %v1156
    %v1159 = vmul.f32 0.5, %v1158
    %v1160 = vsub.f32 1.5, %v1159
    %v1161 = vmul.f32 %v1156, %v1160
    %vm1162 = vweird.f32 %v1145
    %vm1163 = vweird.f32 %v1156
    %vm1164 = vmor %vm1162, %vm1163
    %v1165 = vsel %vm1164, %v1156, %v1161
    %v1166 = vld [vmem:[%s3] sm:$0x3]
    %v1168 = vperm.slane %v1166, 0
    %v1169 = vperm.slane %v1166, 1
    %v1172 = vmul.f32 %v1155, %v1168
    %v1173 = vmul.f32 %v1165, %v1169
    %v1174 = vld [vmem:[%s4] sm:$0x3]
    %v1175 = vmul.f32 %v1134, %v1172
    %v1176 = vmul.f32 %v1135, %v1173
    %v1179 = vrot.slane %v1176, 7
    %vm1180 = vcmask 1040384
    %v1181 = vsel %vm1180, %v1175, %v1179
    %v1183 = vsub.f32 %v1174, %v1181
    %v1184 = vperm.slane %v1172, 0
    %v1185 = vperm.slane %v1173, 0
    %v1186 = vmul.f32 %v402, %v1184
    %v1187 = vmul.f32 %v571, %v1185
    %v1188 = vmul.f32 %v404, %v1184
    %v1189 = vmul.f32 %v573, %v1185
    %v1190 = vmul.f32 %v407, %v1184
    %v1191 = vmul.f32 %v576, %v1185
    %v1192 = vmul.f32 %v409, %v1184
    %v1193 = vmul.f32 %v578, %v1185
    %v1194 = vmul.f32 %v412, %v1184
    %v1195 = vmul.f32 %v581, %v1185
    %v1196 = vmul.f32 %v414, %v1184
    %v1197 = vmul.f32 %v583, %v1185
    %v1198 = vmul.f32 %v417, %v1184
    %v1199 = vmul.f32 %v586, %v1185
    %v1200 = vmul.f32 %v419, %v1184
    %v1201 = vmul.f32 %v588, %v1185
    %v1202 = vmul.f32 %v422, %v1184
    %v1203 = vmul.f32 %v591, %v1185
    %v1204 = vmul.f32 %v424, %v1184
    %v1205 = vmul.f32 %v593, %v1185
    %v1206 = vmul.f32 %v427, %v1184
    %v1207 = vmul.f32 %v596, %v1185
    %v1208 = vmul.f32 %v429, %v1184
    %v1209 = vmul.f32 %v598, %v1185
    %v1210 = vmul.f32 %v432, %v1184
    %v1211 = vmul.f32 %v601, %v1185
    %v1212 = vmul.f32 %v434, %v1184
    %v1213 = vmul.f32 %v603, %v1185
    %v1214 = vmul.f32 %v437, %v1184
    %v1215 = vmul.f32 %v606, %v1185
    %v1216 = vmul.f32 %v439, %v1184
    %v1217 = vmul.f32 %v608, %v1185
    %v1218 = vmul.f32 %v442, %v1184
    %v1219 = vmul.f32 %v611, %v1185
    %v1220 = vmul.f32 %v444, %v1184
    %v1221 = vmul.f32 %v613, %v1185
    %v1222 = vmul.f32 %v447, %v1184
    %v1223 = vmul.f32 %v616, %v1185
    %v1224 = vmul.f32 %v449, %v1184
    %v1225 = vmul.f32 %v618, %v1185
    %v1226 = vmul.f32 %v452, %v1184
    %v1227 = vmul.f32 %v621, %v1185
    %v1228 = vmul.f32 %v454, %v1184
    %v1229 = vmul.f32 %v623, %v1185
    %v1230 = vmul.f32 %v457, %v1184
    %v1231 = vmul.f32 %v626, %v1185
    %v1232 = vmul.f32 %v459, %v1184
    %v1233 = vmul.f32 %v628, %v1185
    %v1234 = vmul.f32 %v462, %v1184
    %v1235 = vmul.f32 %v631, %v1185
    %v1236 = vmul.f32 %v464, %v1184
    %v1237 = vmul.f32 %v633, %v1185
    %v1238 = vmul.f32 %v467, %v1184
    %v1239 = vmul.f32 %v636, %v1185
    %v1240 = vmul.f32 %v469, %v1184
    %v1241 = vmul.f32 %v638, %v1185
    %v1242 = vmul.f32 %v472, %v1184
    %v1243 = vmul.f32 %v641, %v1185
    %v1244 = vmul.f32 %v474, %v1184
    %v1245 = vmul.f32 %v643, %v1185
    %v1246 = vmul.f32 %v477, %v1184
    %v1247 = vmul.f32 %v646, %v1185
    %v1248 = vmul.f32 %v479, %v1184
    %v1249 = vmul.f32 %v648, %v1185
    %v1250 = vmul.f32 %v482, %v1184
    %v1251 = vmul.f32 %v651, %v1185
    %v1252 = vmul.f32 %v484, %v1184
    %v1253 = vmul.f32 %v653, %v1185
    %v1254 = vmul.f32 %v487, %v1184
    %v1255 = vmul.f32 %v656, %v1185
    %v1256 = vmul.f32 %v489, %v1184
    %v1257 = vmul.f32 %v658, %v1185
    %v1258 = vmul.f32 %v492, %v1184
    %v1259 = vmul.f32 %v661, %v1185
    %v1260 = vmul.f32 %v494, %v1184
    %v1261 = vmul.f32 %v663, %v1185
    %v1262 = vmul.f32 %v497, %v1184
    %v1263 = vmul.f32 %v666, %v1185
    %v1264 = vmul.f32 %v499, %v1184
    %v1265 = vmul.f32 %v668, %v1185
    %v1266 = vmul.f32 %v502, %v1184
    %v1267 = vmul.f32 %v671, %v1185
    %v1268 = vmul.f32 %v504, %v1184
    %v1269 = vmul.f32 %v673, %v1185
    %v1270 = vmul.f32 %v507, %v1184
    %v1271 = vmul.f32 %v676, %v1185
    %v1272 = vmul.f32 %v509, %v1184
    %v1273 = vmul.f32 %v678, %v1185
    %v1274 = vmul.f32 %v512, %v1184
    %v1275 = vmul.f32 %v681, %v1185
    %v1276 = vmul.f32 %v514, %v1184
    %v1277 = vmul.f32 %v683, %v1185
    %v1278 = vmul.f32 %v517, %v1184
    %v1279 = vmul.f32 %v686, %v1185
    %v1280 = vmul.f32 %v519, %v1184
    %v1281 = vmul.f32 %v688, %v1185
    %v1282 = vmul.f32 %v522, %v1184
    %v1283 = vmul.f32 %v691, %v1185
    %v1284 = vmul.f32 %v524, %v1184
    %v1285 = vmul.f32 %v693, %v1185
    %v1286 = vmul.f32 %v527, %v1184
    %v1287 = vmul.f32 %v696, %v1185
    %v1288 = vmul.f32 %v529, %v1184
    %v1289 = vmul.f32 %v698, %v1185
    %v1290 = vmul.f32 %v532, %v1184
    %v1291 = vmul.f32 %v701, %v1185
    %v1292 = vmul.f32 %v534, %v1184
    %v1293 = vmul.f32 %v703, %v1185
    %v1294 = vmul.f32 %v537, %v1184
    %v1295 = vmul.f32 %v706, %v1185
    %v1296 = vmul.f32 %v539, %v1184
    %v1297 = vmul.f32 %v708, %v1185
    %v1298 = vmul.f32 %v542, %v1184
    %v1299 = vmul.f32 %v711, %v1185
    %v1300 = vmul.f32 %v544, %v1184
    %v1301 = vmul.f32 %v713, %v1185
    %v1302 = vmul.f32 %v547, %v1184
    %v1303 = vmul.f32 %v716, %v1185
    %v1304 = vmul.f32 %v549, %v1184
    %v1305 = vmul.f32 %v718, %v1185
    %v1306 = vmul.f32 %v552, %v1184
    %v1307 = vmul.f32 %v721, %v1185
    %v1308 = vmul.f32 %v554, %v1184
    %v1309 = vmul.f32 %v723, %v1185
    %v1310 = vmul.f32 %v557, %v1184
    %v1311 = vmul.f32 %v726, %v1185
    %v1312 = vmul.f32 %v559, %v1184
    %v1313 = vmul.f32 %v728, %v1185
    %v1315 = vperm.slane %v1183, 0
    %v1316 = vperm.slane %v1183, 1
    %v1319 = vadd.f32 %v1186, %v1315
    %v1320 = vadd.f32 %v1187, %v1316
    %v1321 = vadd.f32 %v1188, %v1315
    %v1322 = vadd.f32 %v1189, %v1316
    %v1323 = vadd.f32 %v1190, %v1315
    %v1324 = vadd.f32 %v1191, %v1316
    %v1325 = vadd.f32 %v1192, %v1315
    %v1326 = vadd.f32 %v1193, %v1316
    %v1327 = vadd.f32 %v1194, %v1315
    %v1328 = vadd.f32 %v1195, %v1316
    %v1329 = vadd.f32 %v1196, %v1315
    %v1330 = vadd.f32 %v1197, %v1316
    %v1331 = vadd.f32 %v1198, %v1315
    %v1332 = vadd.f32 %v1199, %v1316
    %v1333 = vadd.f32 %v1200, %v1315
    %v1334 = vadd.f32 %v1201, %v1316
    %v1335 = vadd.f32 %v1202, %v1315
    %v1336 = vadd.f32 %v1203, %v1316
    %v1337 = vadd.f32 %v1204, %v1315
    %v1338 = vadd.f32 %v1205, %v1316
    %v1339 = vadd.f32 %v1206, %v1315
    %v1340 = vadd.f32 %v1207, %v1316
    %v1341 = vadd.f32 %v1208, %v1315
    %v1342 = vadd.f32 %v1209, %v1316
    %v1343 = vadd.f32 %v1210, %v1315
    %v1344 = vadd.f32 %v1211, %v1316
    %v1345 = vadd.f32 %v1212, %v1315
    %v1346 = vadd.f32 %v1213, %v1316
    %v1347 = vadd.f32 %v1214, %v1315
    %v1348 = vadd.f32 %v1215, %v1316
    %v1349 = vadd.f32 %v1216, %v1315
    %v1350 = vadd.f32 %v1217, %v1316
    %v1351 = vadd.f32 %v1218, %v1315
    %v1352 = vadd.f32 %v1219, %v1316
    %v1353 = vadd.f32 %v1220, %v1315
    %v1354 = vadd.f32 %v1221, %v1316
    %v1355 = vadd.f32 %v1222, %v1315
    %v1356 = vadd.f32 %v1223, %v1316
    %v1357 = vadd.f32 %v1224, %v1315
    %v1358 = vadd.f32 %v1225, %v1316
    %v1359 = vadd.f32 %v1226, %v1315
    %v1360 = vadd.f32 %v1227, %v1316
    %v1361 = vadd.f32 %v1228, %v1315
    %v1362 = vadd.f32 %v1229, %v1316
    %v1363 = vadd.f32 %v1230, %v1315
    %v1364 = vadd.f32 %v1231, %v1316
    %v1365 = vadd.f32 %v1232, %v1315
    %v1366 = vadd.f32 %v1233, %v1316
    %v1367 = vadd.f32 %v1234, %v1315
    %v1368 = vadd.f32 %v1235, %v1316
    %v1369 = vadd.f32 %v1236, %v1315
    %v1370 = vadd.f32 %v1237, %v1316
    %v1371 = vadd.f32 %v1238, %v1315
    %v1372 = vadd.f32 %v1239, %v1316
    %v1373 = vadd.f32 %v1240, %v1315
    %v1374 = vadd.f32 %v1241, %v1316
    %v1375 = vadd.f32 %v1242, %v1315
    %v1376 = vadd.f32 %v1243, %v1316
    %v1377 = vadd.f32 %v1244, %v1315
    %v1378 = vadd.f32 %v1245, %v1316
    %v1379 = vadd.f32 %v1246, %v1315
    %v1380 = vadd.f32 %v1247, %v1316
    %v1381 = vadd.f32 %v1248, %v1315
    %v1382 = vadd.f32 %v1249, %v1316
    %v1383 = vadd.f32 %v1250, %v1315
    %v1384 = vadd.f32 %v1251, %v1316
    %v1385 = vadd.f32 %v1252, %v1315
    %v1386 = vadd.f32 %v1253, %v1316
    %v1387 = vadd.f32 %v1254, %v1315
    %v1388 = vadd.f32 %v1255, %v1316
    %v1389 = vadd.f32 %v1256, %v1315
    %v1390 = vadd.f32 %v1257, %v1316
    %v1391 = vadd.f32 %v1258, %v1315
    %v1392 = vadd.f32 %v1259, %v1316
    %v1393 = vadd.f32 %v1260, %v1315
    %v1394 = vadd.f32 %v1261, %v1316
    %v1395 = vadd.f32 %v1262, %v1315
    %v1396 = vadd.f32 %v1263, %v1316
    %v1397 = vadd.f32 %v1264, %v1315
    %v1398 = vadd.f32 %v1265, %v1316
    %v1399 = vadd.f32 %v1266, %v1315
    %v1400 = vadd.f32 %v1267, %v1316
    %v1401 = vadd.f32 %v1268, %v1315
    %v1402 = vadd.f32 %v1269, %v1316
    %v1403 = vadd.f32 %v1270, %v1315
    %v1404 = vadd.f32 %v1271, %v1316
    %v1405 = vadd.f32 %v1272, %v1315
    %v1406 = vadd.f32 %v1273, %v1316
    %v1407 = vadd.f32 %v1274, %v1315
    %v1408 = vadd.f32 %v1275, %v1316
    %v1409 = vadd.f32 %v1276, %v1315
    %v1410 = vadd.f32 %v1277, %v1316
    %v1411 = vadd.f32 %v1278, %v1315
    %v1412 = vadd.f32 %v1279, %v1316
    %v1413 = vadd.f32 %v1280, %v1315
    %v1414 = vadd.f32 %v1281, %v1316
    %v1415 = vadd.f32 %v1282, %v1315
    %v1416 = vadd.f32 %v1283, %v1316
    %v1417 = vadd.f32 %v1284, %v1315
    %v1418 = vadd.f32 %v1285, %v1316
    %v1419 = vadd.f32 %v1286, %v1315
    %v1420 = vadd.f32 %v1287, %v1316
    %v1421 = vadd.f32 %v1288, %v1315
    %v1422 = vadd.f32 %v1289, %v1316
    %v1423 = vadd.f32 %v1290, %v1315
    %v1424 = vadd.f32 %v1291, %v1316
    %v1425 = vadd.f32 %v1292, %v1315
    %v1426 = vadd.f32 %v1293, %v1316
    %v1427 = vadd.f32 %v1294, %v1315
    %v1428 = vadd.f32 %v1295, %v1316
    %v1429 = vadd.f32 %v1296, %v1315
    %v1430 = vadd.f32 %v1297, %v1316
    %v1431 = vadd.f32 %v1298, %v1315
    %v1432 = vadd.f32 %v1299, %v1316
    %v1433 = vadd.f32 %v1300, %v1315
    %v1434 = vadd.f32 %v1301, %v1316
    %v1435 = vadd.f32 %v1302, %v1315
    %v1436 = vadd.f32 %v1303, %v1316
    %v1437 = vadd.f32 %v1304, %v1315
    %v1438 = vadd.f32 %v1305, %v1316
    %v1439 = vadd.f32 %v1306, %v1315
    %v1440 = vadd.f32 %v1307, %v1316
    %v1441 = vadd.f32 %v1308, %v1315
    %v1442 = vadd.f32 %v1309, %v1316
    %v1443 = vadd.f32 %v1310, %v1315
    %v1444 = vadd.f32 %v1311, %v1316
    %v1445 = vadd.f32 %v1312, %v1315
    %v1446 = vadd.f32 %v1313, %v1316
    %v1447 = vmax.f32 %v1319, 0.0
    %v1448 = vmax.f32 %v1320, 0.0
    %v1449 = vmax.f32 %v1321, 0.0
    %v1450 = vmax.f32 %v1322, 0.0
    %v1451 = vmax.f32 %v1323, 0.0
    %v1452 = vmax.f32 %v1324, 0.0
    %v1453 = vmax.f32 %v1325, 0.0
    %v1454 = vmax.f32 %v1326, 0.0
    %v1455 = vmax.f32 %v1327, 0.0
    %v1456 = vmax.f32 %v1328, 0.0
    %v1457 = vmax.f32 %v1329, 0.0
    %v1458 = vmax.f32 %v1330, 0.0
    %v1459 = vmax.f32 %v1331, 0.0
    %v1460 = vmax.f32 %v1332, 0.0
    %v1461 = vmax.f32 %v1333, 0.0
    %v1462 = vmax.f32 %v1334, 0.0
    %v1463 = vmax.f32 %v1335, 0.0
    %v1464 = vmax.f32 %v1336, 0.0
    %v1465 = vmax.f32 %v1337, 0.0
    %v1466 = vmax.f32 %v1338, 0.0
    %v1467 = vmax.f32 %v1339, 0.0
    %v1468 = vmax.f32 %v1340, 0.0
    %v1469 = vmax.f32 %v1341, 0.0
    %v1470 = vmax.f32 %v1342, 0.0
    %v1471 = vmax.f32 %v1343, 0.0
    %v1472 = vmax.f32 %v1344, 0.0
    %v1473 = vmax.f32 %v1345, 0.0
    %v1474 = vmax.f32 %v1346, 0.0
    %v1475 = vmax.f32 %v1347, 0.0
    %v1476 = vmax.f32 %v1348, 0.0
    %v1477 = vmax.f32 %v1349, 0.0
    %v1478 = vmax.f32 %v1350, 0.0
    %v1479 = vmax.f32 %v1351, 0.0
    %v1480 = vmax.f32 %v1352, 0.0
    %v1481 = vmax.f32 %v1353, 0.0
    %v1482 = vmax.f32 %v1354, 0.0
    %v1483 = vmax.f32 %v1355, 0.0
    %v1484 = vmax.f32 %v1356, 0.0
    %v1485 = vmax.f32 %v1357, 0.0
    %v1486 = vmax.f32 %v1358, 0.0
    %v1487 = vmax.f32 %v1359, 0.0
    %v1488 = vmax.f32 %v1360, 0.0
    %v1489 = vmax.f32 %v1361, 0.0
    %v1490 = vmax.f32 %v1362, 0.0
    %v1491 = vmax.f32 %v1363, 0.0
    %v1492 = vmax.f32 %v1364, 0.0
    %v1493 = vmax.f32 %v1365, 0.0
    %v1494 = vmax.f32 %v1366, 0.0
    %v1495 = vmax.f32 %v1367, 0.0
    %v1496 = vmax.f32 %v1368, 0.0
    %v1497 = vmax.f32 %v1369, 0.0
    %v1498 = vmax.f32 %v1370, 0.0
    %v1499 = vmax.f32 %v1371, 0.0
    %v1500 = vmax.f32 %v1372, 0.0
    %v1501 = vmax.f32 %v1373, 0.0
    %v1502 = vmax.f32 %v1374, 0.0
    %v1503 = vmax.f32 %v1375, 0.0
    %v1504 = vmax.f32 %v1376, 0.0
    %v1505 = vmax.f32 %v1377, 0.0
    %v1506 = vmax.f32 %v1378, 0.0
    %v1507 = vmax.f32 %v1379, 0.0
    %v1508 = vmax.f32 %v1380, 0.0
    %v1509 = vmax.f32 %v1381, 0.0
    %v1510 = vmax.f32 %v1382, 0.0
    %v1511 = vmax.f32 %v1383, 0.0
    %v1512 = vmax.f32 %v1384, 0.0
    %v1513 = vmax.f32 %v1385, 0.0
    %v1514 = vmax.f32 %v1386, 0.0
    %v1515 = vmax.f32 %v1387, 0.0
    %v1516 = vmax.f32 %v1388, 0.0
    %v1517 = vmax.f32 %v1389, 0.0
    %v1518 = vmax.f32 %v1390, 0.0
    %v1519 = vmax.f32 %v1391, 0.0
    %v1520 = vmax.f32 %v1392, 0.0
    %v1521 = vmax.f32 %v1393, 0.0
    %v1522 = vmax.f32 %v1394, 0.0
    %v1523 = vmax.f32 %v1395, 0.0
    %v1524 = vmax.f32 %v1396, 0.0
    %v1525 = vmax.f32 %v1397, 0.0
    %v1526 = vmax.f32 %v1398, 0.0
    %v1527 = vmax.f32 %v1399, 0.0
    %v1528 = vmax.f32 %v1400, 0.0
    %v1529 = vmax.f32 %v1401, 0.0
    %v1530 = vmax.f32 %v1402, 0.0
    %v1531 = vmax.f32 %v1403, 0.0
    %v1532 = vmax.f32 %v1404, 0.0
    %v1533 = vmax.f32 %v1405, 0.0
    %v1534 = vmax.f32 %v1406, 0.0
    %v1535 = vmax.f32 %v1407, 0.0
    %v1536 = vmax.f32 %v1408, 0.0
    %v1537 = vmax.f32 %v1409, 0.0
    %v1538 = vmax.f32 %v1410, 0.0
    %v1539 = vmax.f32 %v1411, 0.0
    %v1540 = vmax.f32 %v1412, 0.0
    %v1541 = vmax.f32 %v1413, 0.0
    %v1542 = vmax.f32 %v1414, 0.0
    %v1543 = vmax.f32 %v1415, 0.0
    %v1544 = vmax.f32 %v1416, 0.0
    %v1545 = vmax.f32 %v1417, 0.0
    %v1546 = vmax.f32 %v1418, 0.0
    %v1547 = vmax.f32 %v1419, 0.0
    %v1548 = vmax.f32 %v1420, 0.0
    %v1549 = vmax.f32 %v1421, 0.0
    %v1550 = vmax.f32 %v1422, 0.0
    %v1551 = vmax.f32 %v1423, 0.0
    %v1552 = vmax.f32 %v1424, 0.0
    %v1553 = vmax.f32 %v1425, 0.0
    %v1554 = vmax.f32 %v1426, 0.0
    %v1555 = vmax.f32 %v1427, 0.0
    %v1556 = vmax.f32 %v1428, 0.0
    %v1557 = vmax.f32 %v1429, 0.0
    %v1558 = vmax.f32 %v1430, 0.0
    %v1559 = vmax.f32 %v1431, 0.0
    %v1560 = vmax.f32 %v1432, 0.0
    %v1561 = vmax.f32 %v1433, 0.0
    %v1562 = vmax.f32 %v1434, 0.0
    %v1563 = vmax.f32 %v1435, 0.0
    %v1564 = vmax.f32 %v1436, 0.0
    %v1565 = vmax.f32 %v1437, 0.0
    %v1566 = vmax.f32 %v1438, 0.0
    %v1567 = vmax.f32 %v1439, 0.0
    %v1568 = vmax.f32 %v1440, 0.0
    %v1569 = vmax.f32 %v1441, 0.0
    %v1570 = vmax.f32 %v1442, 0.0
    %v1571 = vmax.f32 %v1443, 0.0
    %v1572 = vmax.f32 %v1444, 0.0
    %v1573 = vmax.f32 %v1445, 0.0
    %v1574 = vmax.f32 %v1446, 0.0
    %v1575 = vsel %vm151, 1, 0
    %v1576 = vsel %vm152, 1, 0
    %v1577 = vsel %vm153, 1, 0
    %v1578 = vsel %vm154, 1, 0
    %v1579 = vsel %vm155, 1, 0
    %v1580 = vsel %vm156, 1, 0
    %v1581 = vsel %vm157, 1, 0
    %v1582 = vsel %vm158, 1, 0
    %v1583 = vsel %vm159, 1, 0
    %v1584 = vsel %vm160, 1, 0
    %v1585 = vsel %vm161, 1, 0
    %v1586 = vsel %vm162, 1, 0
    %v1587 = vsel %vm163, 1, 0
    %v1588 = vsel %vm164, 1, 0
    %v1589 = vsel %vm165, 1, 0
    %v1590 = vsel %vm166, 1, 0
    %v1591 = vsel %vm167, 1, 0
    %v1592 = vsel %vm168, 1, 0
    %v1593 = vsel %vm169, 1, 0
    %v1594 = vsel %vm170, 1, 0
    %v1595 = vsel %vm171, 1, 0
    %v1596 = vsel %vm172, 1, 0
    %v1597 = vsel %vm173, 1, 0
    %v1598 = vsel %vm174, 1, 0
    %v1599 = vsel %vm175, 1, 0
    %v1600 = vsel %vm176, 1, 0
    %v1601 = vsel %vm177, 1, 0
    %v1602 = vsel %vm178, 1, 0
    %v1603 = vsel %vm179, 1, 0
    %v1604 = vsel %vm180, 1, 0
    %v1605 = vsel %vm181, 1, 0
    %v1606 = vsel %vm182, 1, 0
    %v1607 = vsel %vm183, 1, 0
    %v1608 = vsel %vm184, 1, 0
    %v1609 = vsel %vm185, 1, 0
    %v1610 = vsel %vm186, 1, 0
    %v1611 = vsel %vm187, 1, 0
    %v1612 = vsel %vm188, 1, 0
    %v1613 = vsel %vm189, 1, 0
    %v1614 = vsel %vm190, 1, 0
    %v1615 = vsel %vm191, 1, 0
    %v1616 = vsel %vm192, 1, 0
    %v1617 = vsel %vm193, 1, 0
    %v1618 = vsel %vm194, 1, 0
    %v1619 = vsel %vm195, 1, 0
    %v1620 = vsel %vm196, 1, 0
    %v1621 = vsel %vm197, 1, 0
    %v1622 = vsel %vm198, 1, 0
    %v1623 = vsel %vm199, 1, 0
    %v1624 = vsel %vm200, 1, 0
    %v1625 = vsel %vm201, 1, 0
    %v1626 = vsel %vm202, 1, 0
    %v1627 = vsel %vm203, 1, 0
    %v1628 = vsel %vm204, 1, 0
    %v1629 = vsel %vm205, 1, 0
    %v1630 = vsel %vm206, 1, 0
    %v1631 = vsel %vm207, 1, 0
    %v1632 = vsel %vm208, 1, 0
    %v1633 = vsel %vm209, 1, 0
    %v1634 = vsel %vm210, 1, 0
    %v1635 = vsel %vm211, 1, 0
    %v1636 = vsel %vm212, 1, 0
    %v1637 = vsel %vm213, 1, 0
    %v1638 = vsel %vm214, 1, 0
    %vm1639 = vcmp.eq.s32.totalorder %v1575, 1
    %vm1640 = vcmp.eq.s32.totalorder %v1576, 1
    %vm1641 = vcmp.eq.s32.totalorder %v1577, 1
    %vm1642 = vcmp.eq.s32.totalorder %v1578, 1
    %vm1643 = vcmp.eq.s32.totalorder %v1579, 1
    %vm1644 = vcmp.eq.s32.totalorder %v1580, 1
    %vm1645 = vcmp.eq.s32.totalorder %v1581, 1
    %vm1646 = vcmp.eq.s32.totalorder %v1582, 1
    %vm1647 = vcmp.eq.s32.totalorder %v1583, 1
    %vm1648 = vcmp.eq.s32.totalorder %v1584, 1
    %vm1649 = vcmp.eq.s32.totalorder %v1585, 1
    %vm1650 = vcmp.eq.s32.totalorder %v1586, 1
    %vm1651 = vcmp.eq.s32.totalorder %v1587, 1
    %vm1652 = vcmp.eq.s32.totalorder %v1588, 1
    %vm1653 = vcmp.eq.s32.totalorder %v1589, 1
    %vm1654 = vcmp.eq.s32.totalorder %v1590, 1
    %vm1655 = vcmp.eq.s32.totalorder %v1591, 1
    %vm1656 = vcmp.eq.s32.totalorder %v1592, 1
    %vm1657 = vcmp.eq.s32.totalorder %v1593, 1
    %vm1658 = vcmp.eq.s32.totalorder %v1594, 1
    %vm1659 = vcmp.eq.s32.totalorder %v1595, 1
    %vm1660 = vcmp.eq.s32.totalorder %v1596, 1
    %vm1661 = vcmp.eq.s32.totalorder %v1597, 1
    %vm1662 = vcmp.eq.s32.totalorder %v1598, 1
    %vm1663 = vcmp.eq.s32.totalorder %v1599, 1
    %vm1664 = vcmp.eq.s32.totalorder %v1600, 1
    %vm1665 = vcmp.eq.s32.totalorder %v1601, 1
    %vm1666 = vcmp.eq.s32.totalorder %v1602, 1
    %vm1667 = vcmp.eq.s32.totalorder %v1603, 1
    %vm1668 = vcmp.eq.s32.totalorder %v1604, 1
    %vm1669 = vcmp.eq.s32.totalorder %v1605, 1
    %vm1670 = vcmp.eq.s32.totalorder %v1606, 1
    %vm1671 = vcmp.eq.s32.totalorder %v1607, 1
    %vm1672 = vcmp.eq.s32.totalorder %v1608, 1
    %vm1673 = vcmp.eq.s32.totalorder %v1609, 1
    %vm1674 = vcmp.eq.s32.totalorder %v1610, 1
    %vm1675 = vcmp.eq.s32.totalorder %v1611, 1
    %vm1676 = vcmp.eq.s32.totalorder %v1612, 1
    %vm1677 = vcmp.eq.s32.totalorder %v1613, 1
    %vm1678 = vcmp.eq.s32.totalorder %v1614, 1
    %vm1679 = vcmp.eq.s32.totalorder %v1615, 1
    %vm1680 = vcmp.eq.s32.totalorder %v1616, 1
    %vm1681 = vcmp.eq.s32.totalorder %v1617, 1
    %vm1682 = vcmp.eq.s32.totalorder %v1618, 1
    %vm1683 = vcmp.eq.s32.totalorder %v1619, 1
    %vm1684 = vcmp.eq.s32.totalorder %v1620, 1
    %vm1685 = vcmp.eq.s32.totalorder %v1621, 1
    %vm1686 = vcmp.eq.s32.totalorder %v1622, 1
    %vm1687 = vcmp.eq.s32.totalorder %v1623, 1
    %vm1688 = vcmp.eq.s32.totalorder %v1624, 1
    %vm1689 = vcmp.eq.s32.totalorder %v1625, 1
    %vm1690 = vcmp.eq.s32.totalorder %v1626, 1
    %vm1691 = vcmp.eq.s32.totalorder %v1627, 1
    %vm1692 = vcmp.eq.s32.totalorder %v1628, 1
    %vm1693 = vcmp.eq.s32.totalorder %v1629, 1
    %vm1694 = vcmp.eq.s32.totalorder %v1630, 1
    %vm1695 = vcmp.eq.s32.totalorder %v1631, 1
    %vm1696 = vcmp.eq.s32.totalorder %v1632, 1
    %vm1697 = vcmp.eq.s32.totalorder %v1633, 1
    %vm1698 = vcmp.eq.s32.totalorder %v1634, 1
    %vm1699 = vcmp.eq.s32.totalorder %v1635, 1
    %vm1700 = vcmp.eq.s32.totalorder %v1636, 1
    %vm1701 = vcmp.eq.s32.totalorder %v1637, 1
    %vm1702 = vcmp.eq.s32.totalorder %v1638, 1
    %v1703 = vsel %vm1639, %v1447, 0.0
    %v1704 = vsel %vm1639, %v1448, 0.0
    %v1705 = vsel %vm1640, %v1449, 0.0
    %v1706 = vsel %vm1640, %v1450, 0.0
    %v1707 = vsel %vm1641, %v1451, 0.0
    %v1708 = vsel %vm1641, %v1452, 0.0
    %v1709 = vsel %vm1642, %v1453, 0.0
    %v1710 = vsel %vm1642, %v1454, 0.0
    %v1711 = vsel %vm1643, %v1455, 0.0
    %v1712 = vsel %vm1643, %v1456, 0.0
    %v1713 = vsel %vm1644, %v1457, 0.0
    %v1714 = vsel %vm1644, %v1458, 0.0
    %v1715 = vsel %vm1645, %v1459, 0.0
    %v1716 = vsel %vm1645, %v1460, 0.0
    %v1717 = vsel %vm1646, %v1461, 0.0
    %v1718 = vsel %vm1646, %v1462, 0.0
    %v1719 = vsel %vm1647, %v1463, 0.0
    %v1720 = vsel %vm1647, %v1464, 0.0
    %v1721 = vsel %vm1648, %v1465, 0.0
    %v1722 = vsel %vm1648, %v1466, 0.0
    %v1723 = vsel %vm1649, %v1467, 0.0
    %v1724 = vsel %vm1649, %v1468, 0.0
    %v1725 = vsel %vm1650, %v1469, 0.0
    %v1726 = vsel %vm1650, %v1470, 0.0
    %v1727 = vsel %vm1651, %v1471, 0.0
    %v1728 = vsel %vm1651, %v1472, 0.0
    %v1729 = vsel %vm1652, %v1473, 0.0
    %v1730 = vsel %vm1652, %v1474, 0.0
    %v1731 = vsel %vm1653, %v1475, 0.0
    %v1732 = vsel %vm1653, %v1476, 0.0
    %v1733 = vsel %vm1654, %v1477, 0.0
    %v1734 = vsel %vm1654, %v1478, 0.0
    %v1735 = vsel %vm1655, %v1479, 0.0
    %v1736 = vsel %vm1655, %v1480, 0.0
    %v1737 = vsel %vm1656, %v1481, 0.0
    %v1738 = vsel %vm1656, %v1482, 0.0
    %v1739 = vsel %vm1657, %v1483, 0.0
    %v1740 = vsel %vm1657, %v1484, 0.0
    %v1741 = vsel %vm1658, %v1485, 0.0
    %v1742 = vsel %vm1658, %v1486, 0.0
    %v1743 = vsel %vm1659, %v1487, 0.0
    %v1744 = vsel %vm1659, %v1488, 0.0
    %v1745 = vsel %vm1660, %v1489, 0.0
    %v1746 = vsel %vm1660, %v1490, 0.0
    %v1747 = vsel %vm1661, %v1491, 0.0
    %v1748 = vsel %vm1661, %v1492, 0.0
    %v1749 = vsel %vm1662, %v1493, 0.0
    %v1750 = vsel %vm1662, %v1494, 0.0
    %v1751 = vsel %vm1663, %v1495, 0.0
    %v1752 = vsel %vm1663, %v1496, 0.0
    %v1753 = vsel %vm1664, %v1497, 0.0
    %v1754 = vsel %vm1664, %v1498, 0.0
    %v1755 = vsel %vm1665, %v1499, 0.0
    %v1756 = vsel %vm1665, %v1500, 0.0
    %v1757 = vsel %vm1666, %v1501, 0.0
    %v1758 = vsel %vm1666, %v1502, 0.0
    %v1759 = vsel %vm1667, %v1503, 0.0
    %v1760 = vsel %vm1667, %v1504, 0.0
    %v1761 = vsel %vm1668, %v1505, 0.0
    %v1762 = vsel %vm1668, %v1506, 0.0
    %v1763 = vsel %vm1669, %v1507, 0.0
    %v1764 = vsel %vm1669, %v1508, 0.0
    %v1765 = vsel %vm1670, %v1509, 0.0
    %v1766 = vsel %vm1670, %v1510, 0.0
    %v1767 = vsel %vm1671, %v1511, 0.0
    %v1768 = vsel %vm1671, %v1512, 0.0
    %v1769 = vsel %vm1672, %v1513, 0.0
    %v1770 = vsel %vm1672, %v1514, 0.0
    %v1771 = vsel %vm1673, %v1515, 0.0
    %v1772 = vsel %vm1673, %v1516, 0.0
    %v1773 = vsel %vm1674, %v1517, 0.0
    %v1774 = vsel %vm1674, %v1518, 0.0
    %v1775 = vsel %vm1675, %v1519, 0.0
    %v1776 = vsel %vm1675, %v1520, 0.0
    %v1777 = vsel %vm1676, %v1521, 0.0
    %v1778 = vsel %vm1676, %v1522, 0.0
    %v1779 = vsel %vm1677, %v1523, 0.0
    %v1780 = vsel %vm1677, %v1524, 0.0
    %v1781 = vsel %vm1678, %v1525, 0.0
    %v1782 = vsel %vm1678, %v1526, 0.0
    %v1783 = vsel %vm1679, %v1527, 0.0
    %v1784 = vsel %vm1679, %v1528, 0.0
    %v1785 = vsel %vm1680, %v1529, 0.0
    %v1786 = vsel %vm1680, %v1530, 0.0
    %v1787 = vsel %vm1681, %v1531, 0.0
    %v1788 = vsel %vm1681, %v1532, 0.0
    %v1789 = vsel %vm1682, %v1533, 0.0
    %v1790 = vsel %vm1682, %v1534, 0.0
    %v1791 = vsel %vm1683, %v1535, 0.0
    %v1792 = vsel %vm1683, %v1536, 0.0
    %v1793 = vsel %vm1684, %v1537, 0.0
    %v1794 = vsel %vm1684, %v1538, 0.0
    %v1795 = vsel %vm1685, %v1539, 0.0
    %v1796 = vsel %vm1685, %v1540, 0.0
    %v1797 = vsel %vm1686, %v1541, 0.0
    %v1798 = vsel %vm1686, %v1542, 0.0
    %v1799 = vsel %vm1687, %v1543, 0.0
    %v1800 = vsel %vm1687, %v1544, 0.0
    %v1801 = vsel %vm1688, %v1545, 0.0
    %v1802 = vsel %vm1688, %v1546, 0.0
    %v1803 = vsel %vm1689, %v1547, 0.0
    %v1804 = vsel %vm1689, %v1548, 0.0
    %v1805 = vsel %vm1690, %v1549, 0.0
    %v1806 = vsel %vm1690, %v1550, 0.0
    %v1807 = vsel %vm1691, %v1551, 0.0
    %v1808 = vsel %vm1691, %v1552, 0.0
    %v1809 = vsel %vm1692, %v1553, 0.0
    %v1810 = vsel %vm1692, %v1554, 0.0
    %v1811 = vsel %vm1693, %v1555, 0.0
    %v1812 = vsel %vm1693, %v1556, 0.0
    %v1813 = vsel %vm1694, %v1557, 0.0
    %v1814 = vsel %vm1694, %v1558, 0.0
    %v1815 = vsel %vm1695, %v1559, 0.0
    %v1816 = vsel %vm1695, %v1560, 0.0
    %v1817 = vsel %vm1696, %v1561, 0.0
    %v1818 = vsel %vm1696, %v1562, 0.0
    %v1819 = vsel %vm1697, %v1563, 0.0
    %v1820 = vsel %vm1697, %v1564, 0.0
    %v1821 = vsel %vm1698, %v1565, 0.0
    %v1822 = vsel %vm1698, %v1566, 0.0
    %v1823 = vsel %vm1699, %v1567, 0.0
    %v1824 = vsel %vm1699, %v1568, 0.0
    %v1825 = vsel %vm1700, %v1569, 0.0
    %v1826 = vsel %vm1700, %v1570, 0.0
    %v1827 = vsel %vm1701, %v1571, 0.0
    %v1828 = vsel %vm1701, %v1572, 0.0
    %v1829 = vsel %vm1702, %v1573, 0.0
    %v1830 = vsel %vm1702, %v1574, 0.0
    %v1831 = vpack.c.bf16 %v1705, %v1703
    %v1832 = vpack.c.bf16 %v1706, %v1704
    %v1833 = vpack.c.bf16 %v1709, %v1707
    %v1834 = vpack.c.bf16 %v1710, %v1708
    %v1835 = vpack.c.bf16 %v1713, %v1711
    %v1836 = vpack.c.bf16 %v1714, %v1712
    %v1837 = vpack.c.bf16 %v1717, %v1715
    %v1838 = vpack.c.bf16 %v1718, %v1716
    %v1839 = vpack.c.bf16 %v1721, %v1719
    %v1840 = vpack.c.bf16 %v1722, %v1720
    %v1841 = vpack.c.bf16 %v1725, %v1723
    %v1842 = vpack.c.bf16 %v1726, %v1724
    %v1843 = vpack.c.bf16 %v1729, %v1727
    %v1844 = vpack.c.bf16 %v1730, %v1728
    %v1845 = vpack.c.bf16 %v1733, %v1731
    %v1846 = vpack.c.bf16 %v1734, %v1732
    %v1847 = vpack.c.bf16 %v1737, %v1735
    %v1848 = vpack.c.bf16 %v1738, %v1736
    %v1849 = vpack.c.bf16 %v1741, %v1739
    %v1850 = vpack.c.bf16 %v1742, %v1740
    %v1851 = vpack.c.bf16 %v1745, %v1743
    %v1852 = vpack.c.bf16 %v1746, %v1744
    %v1853 = vpack.c.bf16 %v1749, %v1747
    %v1854 = vpack.c.bf16 %v1750, %v1748
    %v1855 = vpack.c.bf16 %v1753, %v1751
    %v1856 = vpack.c.bf16 %v1754, %v1752
    %v1857 = vpack.c.bf16 %v1757, %v1755
    %v1858 = vpack.c.bf16 %v1758, %v1756
    %v1859 = vpack.c.bf16 %v1761, %v1759
    %v1860 = vpack.c.bf16 %v1762, %v1760
    %v1861 = vpack.c.bf16 %v1765, %v1763
    %v1862 = vpack.c.bf16 %v1766, %v1764
    %v1863 = vpack.c.bf16 %v1769, %v1767
    %v1864 = vpack.c.bf16 %v1770, %v1768
    %v1865 = vpack.c.bf16 %v1773, %v1771
    %v1866 = vpack.c.bf16 %v1774, %v1772
    %v1867 = vpack.c.bf16 %v1777, %v1775
    %v1868 = vpack.c.bf16 %v1778, %v1776
    %v1869 = vpack.c.bf16 %v1781, %v1779
    %v1870 = vpack.c.bf16 %v1782, %v1780
    %v1871 = vpack.c.bf16 %v1785, %v1783
    %v1872 = vpack.c.bf16 %v1786, %v1784
    %v1873 = vpack.c.bf16 %v1789, %v1787
    %v1874 = vpack.c.bf16 %v1790, %v1788
    %v1875 = vpack.c.bf16 %v1793, %v1791
    %v1876 = vpack.c.bf16 %v1794, %v1792
    %v1877 = vpack.c.bf16 %v1797, %v1795
    %v1878 = vpack.c.bf16 %v1798, %v1796
    %v1879 = vpack.c.bf16 %v1801, %v1799
    %v1880 = vpack.c.bf16 %v1802, %v1800
    %v1881 = vpack.c.bf16 %v1805, %v1803
    %v1882 = vpack.c.bf16 %v1806, %v1804
    %v1883 = vpack.c.bf16 %v1809, %v1807
    %v1884 = vpack.c.bf16 %v1810, %v1808
    %v1885 = vpack.c.bf16 %v1813, %v1811
    %v1886 = vpack.c.bf16 %v1814, %v1812
    %v1887 = vpack.c.bf16 %v1817, %v1815
    %v1888 = vpack.c.bf16 %v1818, %v1816
    %v1889 = vpack.c.bf16 %v1821, %v1819
    %v1890 = vpack.c.bf16 %v1822, %v1820
    %v1891 = vpack.c.bf16 %v1825, %v1823
    %v1892 = vpack.c.bf16 %v1826, %v1824
    %v1893 = vpack.c.bf16 %v1829, %v1827
    %v1894 = vpack.c.bf16 %v1830, %v1828
    %v1895 = vld [vmem:[%s2] sm:$0xf]
    %v1896 = vld [vmem:[%s2 + $0x4] sm:$0xf]
    %v1897 = vld [vmem:[%s2 + $0x8] sm:$0xf]
    %v1898 = vld [vmem:[%s2 + $0xc] sm:$0xf]
    %v1899 = vld [vmem:[%s2 + $0x10] sm:$0xf]
    %v1900 = vld [vmem:[%s2 + $0x14] sm:$0xf]
    %v1901 = vld [vmem:[%s2 + $0x18] sm:$0xf]
    %v1902 = vld [vmem:[%s2 + $0x1c] sm:$0xf]
    %v1903 = vld [vmem:[%s2 + $0x20] sm:$0xf]
    %v1904 = vld [vmem:[%s2 + $0x24] sm:$0xf]
    %v1905 = vld [vmem:[%s2 + $0x28] sm:$0xf]
    %v1906 = vld [vmem:[%s2 + $0x2c] sm:$0xf]
    %v1907 = vld [vmem:[%s2 + $0x30] sm:$0xf]
    %v1908 = vld [vmem:[%s2 + $0x34] sm:$0xf]
    %v1909 = vld [vmem:[%s2 + $0x38] sm:$0xf]
    %v1910 = vld [vmem:[%s2 + $0x3c] sm:$0xf]
    %v1911 = vld [vmem:[%s2 + $0x40] sm:$0xf]
    %v1912 = vld [vmem:[%s2 + $0x44] sm:$0xf]
    %v1913 = vld [vmem:[%s2 + $0x48] sm:$0xf]
    %v1914 = vld [vmem:[%s2 + $0x4c] sm:$0xf]
    %v1915 = vld [vmem:[%s2 + $0x50] sm:$0xf]
    %v1916 = vld [vmem:[%s2 + $0x54] sm:$0xf]
    %v1917 = vld [vmem:[%s2 + $0x58] sm:$0xf]
    %v1918 = vld [vmem:[%s2 + $0x5c] sm:$0xf]
    %v1919 = vld [vmem:[%s2 + $0x60] sm:$0xf]
    %v1920 = vld [vmem:[%s2 + $0x64] sm:$0xf]
    %v1921 = vld [vmem:[%s2 + $0x68] sm:$0xf]
    %v1922 = vld [vmem:[%s2 + $0x6c] sm:$0xf]
    %v1923 = vld [vmem:[%s2 + $0x70] sm:$0xf]
    %v1924 = vld [vmem:[%s2 + $0x74] sm:$0xf]
    %v1925 = vld [vmem:[%s2 + $0x78] sm:$0xf]
    %v1926 = vld [vmem:[%s2 + $0x7c] sm:$0xf]
    %v1959 = vunpack.c.l.b16 %v1895
    %v1960 = vunpack.c.l.b16 %v1896
    %v1961 = vunpack.c.l.b16 %v1897
    %v1962 = vunpack.c.l.b16 %v1898
    %v1963 = vunpack.c.l.b16 %v1899
    %v1964 = vunpack.c.l.b16 %v1900
    %v1965 = vunpack.c.l.b16 %v1901
    %v1966 = vunpack.c.l.b16 %v1902
    %v1967 = vunpack.c.l.b16 %v1903
    %v1968 = vunpack.c.l.b16 %v1904
    %v1969 = vunpack.c.l.b16 %v1905
    %v1970 = vunpack.c.l.b16 %v1906
    %v1971 = vunpack.c.l.b16 %v1907
    %v1972 = vunpack.c.l.b16 %v1908
    %v1973 = vunpack.c.l.b16 %v1909
    %v1974 = vunpack.c.l.b16 %v1910
    %v1975 = vunpack.c.l.b16 %v1911
    %v1976 = vunpack.c.l.b16 %v1912
    %v1977 = vunpack.c.l.b16 %v1913
    %v1978 = vunpack.c.l.b16 %v1914
    %v1979 = vunpack.c.l.b16 %v1915
    %v1980 = vunpack.c.l.b16 %v1916
    %v1981 = vunpack.c.l.b16 %v1917
    %v1982 = vunpack.c.l.b16 %v1918
    %v1983 = vunpack.c.l.b16 %v1919
    %v1984 = vunpack.c.l.b16 %v1920
    %v1985 = vunpack.c.l.b16 %v1921
    %v1986 = vunpack.c.l.b16 %v1922
    %v1987 = vunpack.c.l.b16 %v1923
    %v1988 = vunpack.c.l.b16 %v1924
    %v1989 = vunpack.c.l.b16 %v1925
    %v1990 = vunpack.c.l.b16 %v1926
    %v1991 = vpack.c.b16 %v1960, %v1959
    %v1992 = vpack.c.b16 %v1962, %v1961
    %v1993 = vpack.c.b16 %v1964, %v1963
    %v1994 = vpack.c.b16 %v1966, %v1965
    %v1995 = vpack.c.b16 %v1968, %v1967
    %v1996 = vpack.c.b16 %v1970, %v1969
    %v1997 = vpack.c.b16 %v1972, %v1971
    %v1998 = vpack.c.b16 %v1974, %v1973
    %v1999 = vpack.c.b16 %v1976, %v1975
    %v2000 = vpack.c.b16 %v1978, %v1977
    %v2001 = vpack.c.b16 %v1980, %v1979
    %v2002 = vpack.c.b16 %v1982, %v1981
    %v2003 = vpack.c.b16 %v1984, %v1983
    %v2004 = vpack.c.b16 %v1986, %v1985
    %v2005 = vpack.c.b16 %v1988, %v1987
    %v2006 = vpack.c.b16 %v1990, %v1989
    %2023 = vmatpush.bf16.msra.mxu0 %v1998
    %2024 = vmatpush.bf16.msra.mxu0 %v1997
    %2025 = vmatpush.bf16.msra.mxu0 %v1996
    %2026 = vmatpush.bf16.msra.mxu0 %v1995
    %2027 = vmatpush.bf16.msra.mxu0 %v1994
    %2028 = vmatpush.bf16.msra.mxu0 %v1993
    %2029 = vmatpush.bf16.msra.mxu0 %v1992
    %2030 = vmatpush.bf16.msra.mxu0 %v1991
    %2031 = vmatmul.bf16.gmra.mxu0 %v1831
    %v2032 = vpop.f32.mrf.mxu0
    %v2033 = vadd.f32 0.0, %v2032
    %v2034 = vpop.f32.mrf.mxu0
    %v2035 = vadd.f32 0.0, %v2034
    %2036 = vmatmul.bf16.gmra.mxu0 %v1833
    %v2037 = vpop.f32.mrf.mxu0
    %v2038 = vadd.f32 0.0, %v2037
    %v2039 = vpop.f32.mrf.mxu0
    %v2040 = vadd.f32 0.0, %v2039
    %2041 = vmatmul.bf16.gmra.mxu0 %v1835
    %v2042 = vpop.f32.mrf.mxu0
    %v2043 = vadd.f32 0.0, %v2042
    %v2044 = vpop.f32.mrf.mxu0
    %v2045 = vadd.f32 0.0, %v2044
    %2046 = vmatmul.bf16.gmra.mxu0 %v1837
    %v2047 = vpop.f32.mrf.mxu0
    %v2048 = vadd.f32 0.0, %v2047
    %v2049 = vpop.f32.mrf.mxu0
    %v2050 = vadd.f32 0.0, %v2049
    %2051 = vmatmul.bf16.gmra.mxu0 %v1839
    %v2052 = vpop.f32.mrf.mxu0
    %v2053 = vadd.f32 0.0, %v2052
    %v2054 = vpop.f32.mrf.mxu0
    %v2055 = vadd.f32 0.0, %v2054
    %2056 = vmatmul.bf16.gmra.mxu0 %v1841
    %v2057 = vpop.f32.mrf.mxu0
    %v2058 = vadd.f32 0.0, %v2057
    %v2059 = vpop.f32.mrf.mxu0
    %v2060 = vadd.f32 0.0, %v2059
    %2061 = vmatmul.bf16.gmra.mxu0 %v1843
    %v2062 = vpop.f32.mrf.mxu0
    %v2063 = vadd.f32 0.0, %v2062
    %v2064 = vpop.f32.mrf.mxu0
    %v2065 = vadd.f32 0.0, %v2064
    %2066 = vmatmul.bf16.gmra.mxu0 %v1845
    %v2067 = vpop.f32.mrf.mxu0
    %v2068 = vadd.f32 0.0, %v2067
    %v2069 = vpop.f32.mrf.mxu0
    %v2070 = vadd.f32 0.0, %v2069
    %2071 = vmatmul.bf16.gmra.mxu0 %v1847
    %v2072 = vpop.f32.mrf.mxu0
    %v2073 = vadd.f32 0.0, %v2072
    %v2074 = vpop.f32.mrf.mxu0
    %v2075 = vadd.f32 0.0, %v2074
    %2076 = vmatmul.bf16.gmra.mxu0 %v1849
    %v2077 = vpop.f32.mrf.mxu0
    %v2078 = vadd.f32 0.0, %v2077
    %v2079 = vpop.f32.mrf.mxu0
    %v2080 = vadd.f32 0.0, %v2079
    %2081 = vmatmul.bf16.gmra.mxu0 %v1851
    %v2082 = vpop.f32.mrf.mxu0
    %v2083 = vadd.f32 0.0, %v2082
    %v2084 = vpop.f32.mrf.mxu0
    %v2085 = vadd.f32 0.0, %v2084
    %2086 = vmatmul.bf16.gmra.mxu0 %v1853
    %v2087 = vpop.f32.mrf.mxu0
    %v2088 = vadd.f32 0.0, %v2087
    %v2089 = vpop.f32.mrf.mxu0
    %v2090 = vadd.f32 0.0, %v2089
    %2091 = vmatmul.bf16.gmra.mxu0 %v1855
    %v2092 = vpop.f32.mrf.mxu0
    %v2093 = vadd.f32 0.0, %v2092
    %v2094 = vpop.f32.mrf.mxu0
    %v2095 = vadd.f32 0.0, %v2094
    %2096 = vmatmul.bf16.gmra.mxu0 %v1857
    %v2097 = vpop.f32.mrf.mxu0
    %v2098 = vadd.f32 0.0, %v2097
    %v2099 = vpop.f32.mrf.mxu0
    %v2100 = vadd.f32 0.0, %v2099
    %2101 = vmatmul.bf16.gmra.mxu0 %v1859
    %v2102 = vpop.f32.mrf.mxu0
    %v2103 = vadd.f32 0.0, %v2102
    %v2104 = vpop.f32.mrf.mxu0
    %v2105 = vadd.f32 0.0, %v2104
    %2106 = vmatmul.bf16.gmra.mxu0 %v1861
    %v2107 = vpop.f32.mrf.mxu0
    %v2108 = vadd.f32 0.0, %v2107
    %v2109 = vpop.f32.mrf.mxu0
    %v2110 = vadd.f32 0.0, %v2109
    %2111 = vmatmul.bf16.gmra.mxu0 %v1863
    %v2112 = vpop.f32.mrf.mxu0
    %v2113 = vadd.f32 0.0, %v2112
    %v2114 = vpop.f32.mrf.mxu0
    %v2115 = vadd.f32 0.0, %v2114
    %2116 = vmatmul.bf16.gmra.mxu0 %v1865
    %v2117 = vpop.f32.mrf.mxu0
    %v2118 = vadd.f32 0.0, %v2117
    %v2119 = vpop.f32.mrf.mxu0
    %v2120 = vadd.f32 0.0, %v2119
    %2121 = vmatmul.bf16.gmra.mxu0 %v1867
    %v2122 = vpop.f32.mrf.mxu0
    %v2123 = vadd.f32 0.0, %v2122
    %v2124 = vpop.f32.mrf.mxu0
    %v2125 = vadd.f32 0.0, %v2124
    %2126 = vmatmul.bf16.gmra.mxu0 %v1869
    %v2127 = vpop.f32.mrf.mxu0
    %v2128 = vadd.f32 0.0, %v2127
    %v2129 = vpop.f32.mrf.mxu0
    %v2130 = vadd.f32 0.0, %v2129
    %2131 = vmatmul.bf16.gmra.mxu0 %v1871
    %v2132 = vpop.f32.mrf.mxu0
    %v2133 = vadd.f32 0.0, %v2132
    %v2134 = vpop.f32.mrf.mxu0
    %v2135 = vadd.f32 0.0, %v2134
    %2136 = vmatmul.bf16.gmra.mxu0 %v1873
    %v2137 = vpop.f32.mrf.mxu0
    %v2138 = vadd.f32 0.0, %v2137
    %v2139 = vpop.f32.mrf.mxu0
    %v2140 = vadd.f32 0.0, %v2139
    %2141 = vmatmul.bf16.gmra.mxu0 %v1875
    %v2142 = vpop.f32.mrf.mxu0
    %v2143 = vadd.f32 0.0, %v2142
    %v2144 = vpop.f32.mrf.mxu0
    %v2145 = vadd.f32 0.0, %v2144
    %2146 = vmatmul.bf16.gmra.mxu0 %v1877
    %v2147 = vpop.f32.mrf.mxu0
    %v2148 = vadd.f32 0.0, %v2147
    %v2149 = vpop.f32.mrf.mxu0
    %v2150 = vadd.f32 0.0, %v2149
    %2151 = vmatmul.bf16.gmra.mxu0 %v1879
    %v2152 = vpop.f32.mrf.mxu0
    %v2153 = vadd.f32 0.0, %v2152
    %v2154 = vpop.f32.mrf.mxu0
    %v2155 = vadd.f32 0.0, %v2154
    %2156 = vmatmul.bf16.gmra.mxu0 %v1881
    %v2157 = vpop.f32.mrf.mxu0
    %v2158 = vadd.f32 0.0, %v2157
    %v2159 = vpop.f32.mrf.mxu0
    %v2160 = vadd.f32 0.0, %v2159
    %2161 = vmatmul.bf16.gmra.mxu0 %v1883
    %v2162 = vpop.f32.mrf.mxu0
    %v2163 = vadd.f32 0.0, %v2162
    %v2164 = vpop.f32.mrf.mxu0
    %v2165 = vadd.f32 0.0, %v2164
    %2166 = vmatmul.bf16.gmra.mxu0 %v1885
    %v2167 = vpop.f32.mrf.mxu0
    %v2168 = vadd.f32 0.0, %v2167
    %v2169 = vpop.f32.mrf.mxu0
    %v2170 = vadd.f32 0.0, %v2169
    %2171 = vmatmul.bf16.gmra.mxu0 %v1887
    %v2172 = vpop.f32.mrf.mxu0
    %v2173 = vadd.f32 0.0, %v2172
    %v2174 = vpop.f32.mrf.mxu0
    %v2175 = vadd.f32 0.0, %v2174
    %2176 = vmatmul.bf16.gmra.mxu0 %v1889
    %v2177 = vpop.f32.mrf.mxu0
    %v2178 = vadd.f32 0.0, %v2177
    %v2179 = vpop.f32.mrf.mxu0
    %v2180 = vadd.f32 0.0, %v2179
    %2181 = vmatmul.bf16.gmra.mxu0 %v1891
    %v2182 = vpop.f32.mrf.mxu0
    %v2183 = vadd.f32 0.0, %v2182
    %v2184 = vpop.f32.mrf.mxu0
    %v2185 = vadd.f32 0.0, %v2184
    %2186 = vmatmul.bf16.gmra.mxu0 %v1893
    %v2187 = vpop.f32.mrf.mxu0
    %v2188 = vadd.f32 0.0, %v2187
    %v2189 = vpop.f32.mrf.mxu0
    %v2190 = vadd.f32 0.0, %v2189
    %2191 = vdwg.mxu0
    %2192 = vmatpush.bf16.msra.mxu0 %v2006
    %2193 = vmatpush.bf16.msra.mxu0 %v2005
    %2194 = vmatpush.bf16.msra.mxu0 %v2004
    %2195 = vmatpush.bf16.msra.mxu0 %v2003
    %2196 = vmatpush.bf16.msra.mxu0 %v2002
    %2197 = vmatpush.bf16.msra.mxu0 %v2001
    %2198 = vmatpush.bf16.msra.mxu0 %v2000
    %2199 = vmatpush.bf16.msra.mxu0 %v1999
    %2200 = vmatmul.bf16.gmra.mxu0 %v1832
    %v2201 = vpop.f32.mrf.mxu0
    %v2202 = vadd.f32 %v2033, %v2201
    %v2203 = vpop.f32.mrf.mxu0
    %v2204 = vadd.f32 %v2035, %v2203
    %2205 = vmatmul.bf16.gmra.mxu0 %v1834
    %v2206 = vpop.f32.mrf.mxu0
    %v2207 = vadd.f32 %v2038, %v2206
    %v2208 = vpop.f32.mrf.mxu0
    %v2209 = vadd.f32 %v2040, %v2208
    %2210 = vmatmul.bf16.gmra.mxu0 %v1836
    %v2211 = vpop.f32.mrf.mxu0
    %v2212 = vadd.f32 %v2043, %v2211
    %v2213 = vpop.f32.mrf.mxu0
    %v2214 = vadd.f32 %v2045, %v2213
    %2215 = vmatmul.bf16.gmra.mxu0 %v1838
    %v2216 = vpop.f32.mrf.mxu0
    %v2217 = vadd.f32 %v2048, %v2216
    %v2218 = vpop.f32.mrf.mxu0
    %v2219 = vadd.f32 %v2050, %v2218
    %2220 = vmatmul.bf16.gmra.mxu0 %v1840
    %v2221 = vpop.f32.mrf.mxu0
    %v2222 = vadd.f32 %v2053, %v2221
    %v2223 = vpop.f32.mrf.mxu0
    %v2224 = vadd.f32 %v2055, %v2223
    %2225 = vmatmul.bf16.gmra.mxu0 %v1842
    %v2226 = vpop.f32.mrf.mxu0
    %v2227 = vadd.f32 %v2058, %v2226
    %v2228 = vpop.f32.mrf.mxu0
    %v2229 = vadd.f32 %v2060, %v2228
    %2230 = vmatmul.bf16.gmra.mxu0 %v1844
    %v2231 = vpop.f32.mrf.mxu0
    %v2232 = vadd.f32 %v2063, %v2231
    %v2233 = vpop.f32.mrf.mxu0
    %v2234 = vadd.f32 %v2065, %v2233
    %2235 = vmatmul.bf16.gmra.mxu0 %v1846
    %v2236 = vpop.f32.mrf.mxu0
    %v2237 = vadd.f32 %v2068, %v2236
    %v2238 = vpop.f32.mrf.mxu0
    %v2239 = vadd.f32 %v2070, %v2238
    %2240 = vmatmul.bf16.gmra.mxu0 %v1848
    %v2241 = vpop.f32.mrf.mxu0
    %v2242 = vadd.f32 %v2073, %v2241
    %v2243 = vpop.f32.mrf.mxu0
    %v2244 = vadd.f32 %v2075, %v2243
    %2245 = vmatmul.bf16.gmra.mxu0 %v1850
    %v2246 = vpop.f32.mrf.mxu0
    %v2247 = vadd.f32 %v2078, %v2246
    %v2248 = vpop.f32.mrf.mxu0
    %v2249 = vadd.f32 %v2080, %v2248
    %2250 = vmatmul.bf16.gmra.mxu0 %v1852
    %v2251 = vpop.f32.mrf.mxu0
    %v2252 = vadd.f32 %v2083, %v2251
    %v2253 = vpop.f32.mrf.mxu0
    %v2254 = vadd.f32 %v2085, %v2253
    %2255 = vmatmul.bf16.gmra.mxu0 %v1854
    %v2256 = vpop.f32.mrf.mxu0
    %v2257 = vadd.f32 %v2088, %v2256
    %v2258 = vpop.f32.mrf.mxu0
    %v2259 = vadd.f32 %v2090, %v2258
    %2260 = vmatmul.bf16.gmra.mxu0 %v1856
    %v2261 = vpop.f32.mrf.mxu0
    %v2262 = vadd.f32 %v2093, %v2261
    %v2263 = vpop.f32.mrf.mxu0
    %v2264 = vadd.f32 %v2095, %v2263
    %2265 = vmatmul.bf16.gmra.mxu0 %v1858
    %v2266 = vpop.f32.mrf.mxu0
    %v2267 = vadd.f32 %v2098, %v2266
    %v2268 = vpop.f32.mrf.mxu0
    %v2269 = vadd.f32 %v2100, %v2268
    %2270 = vmatmul.bf16.gmra.mxu0 %v1860
    %v2271 = vpop.f32.mrf.mxu0
    %v2272 = vadd.f32 %v2103, %v2271
    %v2273 = vpop.f32.mrf.mxu0
    %v2274 = vadd.f32 %v2105, %v2273
    %2275 = vmatmul.bf16.gmra.mxu0 %v1862
    %v2276 = vpop.f32.mrf.mxu0
    %v2277 = vadd.f32 %v2108, %v2276
    %v2278 = vpop.f32.mrf.mxu0
    %v2279 = vadd.f32 %v2110, %v2278
    %2280 = vmatmul.bf16.gmra.mxu0 %v1864
    %v2281 = vpop.f32.mrf.mxu0
    %v2282 = vadd.f32 %v2113, %v2281
    %v2283 = vpop.f32.mrf.mxu0
    %v2284 = vadd.f32 %v2115, %v2283
    %2285 = vmatmul.bf16.gmra.mxu0 %v1866
    %v2286 = vpop.f32.mrf.mxu0
    %v2287 = vadd.f32 %v2118, %v2286
    %v2288 = vpop.f32.mrf.mxu0
    %v2289 = vadd.f32 %v2120, %v2288
    %2290 = vmatmul.bf16.gmra.mxu0 %v1868
    %v2291 = vpop.f32.mrf.mxu0
    %v2292 = vadd.f32 %v2123, %v2291
    %v2293 = vpop.f32.mrf.mxu0
    %v2294 = vadd.f32 %v2125, %v2293
    %2295 = vmatmul.bf16.gmra.mxu0 %v1870
    %v2296 = vpop.f32.mrf.mxu0
    %v2297 = vadd.f32 %v2128, %v2296
    %v2298 = vpop.f32.mrf.mxu0
    %v2299 = vadd.f32 %v2130, %v2298
    %2300 = vmatmul.bf16.gmra.mxu0 %v1872
    %v2301 = vpop.f32.mrf.mxu0
    %v2302 = vadd.f32 %v2133, %v2301
    %v2303 = vpop.f32.mrf.mxu0
    %v2304 = vadd.f32 %v2135, %v2303
    %2305 = vmatmul.bf16.gmra.mxu0 %v1874
    %v2306 = vpop.f32.mrf.mxu0
    %v2307 = vadd.f32 %v2138, %v2306
    %v2308 = vpop.f32.mrf.mxu0
    %v2309 = vadd.f32 %v2140, %v2308
    %2310 = vmatmul.bf16.gmra.mxu0 %v1876
    %v2311 = vpop.f32.mrf.mxu0
    %v2312 = vadd.f32 %v2143, %v2311
    %v2313 = vpop.f32.mrf.mxu0
    %v2314 = vadd.f32 %v2145, %v2313
    %2315 = vmatmul.bf16.gmra.mxu0 %v1878
    %v2316 = vpop.f32.mrf.mxu0
    %v2317 = vadd.f32 %v2148, %v2316
    %v2318 = vpop.f32.mrf.mxu0
    %v2319 = vadd.f32 %v2150, %v2318
    %2320 = vmatmul.bf16.gmra.mxu0 %v1880
    %v2321 = vpop.f32.mrf.mxu0
    %v2322 = vadd.f32 %v2153, %v2321
    %v2323 = vpop.f32.mrf.mxu0
    %v2324 = vadd.f32 %v2155, %v2323
    %2325 = vmatmul.bf16.gmra.mxu0 %v1882
    %v2326 = vpop.f32.mrf.mxu0
    %v2327 = vadd.f32 %v2158, %v2326
    %v2328 = vpop.f32.mrf.mxu0
    %v2329 = vadd.f32 %v2160, %v2328
    %2330 = vmatmul.bf16.gmra.mxu0 %v1884
    %v2331 = vpop.f32.mrf.mxu0
    %v2332 = vadd.f32 %v2163, %v2331
    %v2333 = vpop.f32.mrf.mxu0
    %v2334 = vadd.f32 %v2165, %v2333
    %2335 = vmatmul.bf16.gmra.mxu0 %v1886
    %v2336 = vpop.f32.mrf.mxu0
    %v2337 = vadd.f32 %v2168, %v2336
    %v2338 = vpop.f32.mrf.mxu0
    %v2339 = vadd.f32 %v2170, %v2338
    %2340 = vmatmul.bf16.gmra.mxu0 %v1888
    %v2341 = vpop.f32.mrf.mxu0
    %v2342 = vadd.f32 %v2173, %v2341
    %v2343 = vpop.f32.mrf.mxu0
    %v2344 = vadd.f32 %v2175, %v2343
    %2345 = vmatmul.bf16.gmra.mxu0 %v1890
    %v2346 = vpop.f32.mrf.mxu0
    %v2347 = vadd.f32 %v2178, %v2346
    %v2348 = vpop.f32.mrf.mxu0
    %v2349 = vadd.f32 %v2180, %v2348
    %2350 = vmatmul.bf16.gmra.mxu0 %v1892
    %v2351 = vpop.f32.mrf.mxu0
    %v2352 = vadd.f32 %v2183, %v2351
    %v2353 = vpop.f32.mrf.mxu0
    %v2354 = vadd.f32 %v2185, %v2353
    %2355 = vmatmul.bf16.gmra.mxu0 %v1894
    %v2356 = vpop.f32.mrf.mxu0
    %v2357 = vadd.f32 %v2188, %v2356
    %v2358 = vpop.f32.mrf.mxu0
    %v2359 = vadd.f32 %v2190, %v2358
    %2360 = vdwg.mxu0
    %v2361 = vadd.f32 %v2202, %v2204
    %v2362 = vadd.f32 %v2361, %v2207
    %v2363 = vadd.f32 %v2362, %v2209
    %v2364 = vadd.f32 %v2363, %v2212
    %v2365 = vadd.f32 %v2364, %v2214
    %v2366 = vadd.f32 %v2365, %v2217
    %v2367 = vadd.f32 %v2366, %v2219
    %v2368 = vadd.f32 %v2367, %v2222
    %v2369 = vadd.f32 %v2368, %v2224
    %v2370 = vadd.f32 %v2369, %v2227
    %v2371 = vadd.f32 %v2370, %v2229
    %v2372 = vadd.f32 %v2371, %v2232
    %v2373 = vadd.f32 %v2372, %v2234
    %v2374 = vadd.f32 %v2373, %v2237
    %v2375 = vadd.f32 %v2374, %v2239
    %v2376 = vadd.f32 %v2375, %v2242
    %v2377 = vadd.f32 %v2376, %v2244
    %v2378 = vadd.f32 %v2377, %v2247
    %v2379 = vadd.f32 %v2378, %v2249
    %v2380 = vadd.f32 %v2379, %v2252
    %v2381 = vadd.f32 %v2380, %v2254
    %v2382 = vadd.f32 %v2381, %v2257
    %v2383 = vadd.f32 %v2382, %v2259
    %v2384 = vadd.f32 %v2383, %v2262
    %v2385 = vadd.f32 %v2384, %v2264
    %v2386 = vadd.f32 %v2385, %v2267
    %v2387 = vadd.f32 %v2386, %v2269
    %v2388 = vadd.f32 %v2387, %v2272
    %v2389 = vadd.f32 %v2388, %v2274
    %v2390 = vadd.f32 %v2389, %v2277
    %v2391 = vadd.f32 %v2390, %v2279
    %v2392 = vadd.f32 %v2391, %v2282
    %v2393 = vadd.f32 %v2392, %v2284
    %v2394 = vadd.f32 %v2393, %v2287
    %v2395 = vadd.f32 %v2394, %v2289
    %v2396 = vadd.f32 %v2395, %v2292
    %v2397 = vadd.f32 %v2396, %v2294
    %v2398 = vadd.f32 %v2397, %v2297
    %v2399 = vadd.f32 %v2398, %v2299
    %v2400 = vadd.f32 %v2399, %v2302
    %v2401 = vadd.f32 %v2400, %v2304
    %v2402 = vadd.f32 %v2401, %v2307
    %v2403 = vadd.f32 %v2402, %v2309
    %v2404 = vadd.f32 %v2403, %v2312
    %v2405 = vadd.f32 %v2404, %v2314
    %v2406 = vadd.f32 %v2405, %v2317
    %v2407 = vadd.f32 %v2406, %v2319
    %v2408 = vadd.f32 %v2407, %v2322
    %v2409 = vadd.f32 %v2408, %v2324
    %v2410 = vadd.f32 %v2409, %v2327
    %v2411 = vadd.f32 %v2410, %v2329
    %v2412 = vadd.f32 %v2411, %v2332
    %v2413 = vadd.f32 %v2412, %v2334
    %v2414 = vadd.f32 %v2413, %v2337
    %v2415 = vadd.f32 %v2414, %v2339
    %v2416 = vadd.f32 %v2415, %v2342
    %v2417 = vadd.f32 %v2416, %v2344
    %v2418 = vadd.f32 %v2417, %v2347
    %v2419 = vadd.f32 %v2418, %v2349
    %v2420 = vadd.f32 %v2419, %v2352
    %v2421 = vadd.f32 %v2420, %v2354
    %v2422 = vadd.f32 %v2421, %v2357
    %v2423 = vadd.f32 %v2422, %v2359
    %v2424 = vrot.slane %v2423, 4
    %v2425 = vadd.f32 %v2423, %v2424
    %v2426 = vrot.slane %v2425, 2
    %v2427 = vadd.f32 %v2425, %v2426
    %v2428 = vrot.slane %v2427, 1
    %v2429 = vadd.f32 %v2427, %v2428
    %v2430 = vmul.f32 %v2202, %v2202
    %v2431 = vmul.f32 %v2204, %v2204
    %v2432 = vmul.f32 %v2207, %v2207
    %v2433 = vmul.f32 %v2209, %v2209
    %v2434 = vmul.f32 %v2212, %v2212
    %v2435 = vmul.f32 %v2214, %v2214
    %v2436 = vmul.f32 %v2217, %v2217
    %v2437 = vmul.f32 %v2219, %v2219
    %v2438 = vmul.f32 %v2222, %v2222
    %v2439 = vmul.f32 %v2224, %v2224
    %v2440 = vmul.f32 %v2227, %v2227
    %v2441 = vmul.f32 %v2229, %v2229
    %v2442 = vmul.f32 %v2232, %v2232
    %v2443 = vmul.f32 %v2234, %v2234
    %v2444 = vmul.f32 %v2237, %v2237
    %v2445 = vmul.f32 %v2239, %v2239
    %v2446 = vmul.f32 %v2242, %v2242
    %v2447 = vmul.f32 %v2244, %v2244
    %v2448 = vmul.f32 %v2247, %v2247
    %v2449 = vmul.f32 %v2249, %v2249
    %v2450 = vmul.f32 %v2252, %v2252
    %v2451 = vmul.f32 %v2254, %v2254
    %v2452 = vmul.f32 %v2257, %v2257
    %v2453 = vmul.f32 %v2259, %v2259
    %v2454 = vmul.f32 %v2262, %v2262
    %v2455 = vmul.f32 %v2264, %v2264
    %v2456 = vmul.f32 %v2267, %v2267
    %v2457 = vmul.f32 %v2269, %v2269
    %v2458 = vmul.f32 %v2272, %v2272
    %v2459 = vmul.f32 %v2274, %v2274
    %v2460 = vmul.f32 %v2277, %v2277
    %v2461 = vmul.f32 %v2279, %v2279
    %v2462 = vmul.f32 %v2282, %v2282
    %v2463 = vmul.f32 %v2284, %v2284
    %v2464 = vmul.f32 %v2287, %v2287
    %v2465 = vmul.f32 %v2289, %v2289
    %v2466 = vmul.f32 %v2292, %v2292
    %v2467 = vmul.f32 %v2294, %v2294
    %v2468 = vmul.f32 %v2297, %v2297
    %v2469 = vmul.f32 %v2299, %v2299
    %v2470 = vmul.f32 %v2302, %v2302
    %v2471 = vmul.f32 %v2304, %v2304
    %v2472 = vmul.f32 %v2307, %v2307
    %v2473 = vmul.f32 %v2309, %v2309
    %v2474 = vmul.f32 %v2312, %v2312
    %v2475 = vmul.f32 %v2314, %v2314
    %v2476 = vmul.f32 %v2317, %v2317
    %v2477 = vmul.f32 %v2319, %v2319
    %v2478 = vmul.f32 %v2322, %v2322
    %v2479 = vmul.f32 %v2324, %v2324
    %v2480 = vmul.f32 %v2327, %v2327
    %v2481 = vmul.f32 %v2329, %v2329
    %v2482 = vmul.f32 %v2332, %v2332
    %v2483 = vmul.f32 %v2334, %v2334
    %v2484 = vmul.f32 %v2337, %v2337
    %v2485 = vmul.f32 %v2339, %v2339
    %v2486 = vmul.f32 %v2342, %v2342
    %v2487 = vmul.f32 %v2344, %v2344
    %v2488 = vmul.f32 %v2347, %v2347
    %v2489 = vmul.f32 %v2349, %v2349
    %v2490 = vmul.f32 %v2352, %v2352
    %v2491 = vmul.f32 %v2354, %v2354
    %v2492 = vmul.f32 %v2357, %v2357
    %v2493 = vmul.f32 %v2359, %v2359
    %v2494 = vadd.f32 %v2430, %v2431
    %v2495 = vadd.f32 %v2494, %v2432
    %v2496 = vadd.f32 %v2495, %v2433
    %v2497 = vadd.f32 %v2496, %v2434
    %v2498 = vadd.f32 %v2497, %v2435
    %v2499 = vadd.f32 %v2498, %v2436
    %v2500 = vadd.f32 %v2499, %v2437
    %v2501 = vadd.f32 %v2500, %v2438
    %v2502 = vadd.f32 %v2501, %v2439
    %v2503 = vadd.f32 %v2502, %v2440
    %v2504 = vadd.f32 %v2503, %v2441
    %v2505 = vadd.f32 %v2504, %v2442
    %v2506 = vadd.f32 %v2505, %v2443
    %v2507 = vadd.f32 %v2506, %v2444
    %v2508 = vadd.f32 %v2507, %v2445
    %v2509 = vadd.f32 %v2508, %v2446
    %v2510 = vadd.f32 %v2509, %v2447
    %v2511 = vadd.f32 %v2510, %v2448
    %v2512 = vadd.f32 %v2511, %v2449
    %v2513 = vadd.f32 %v2512, %v2450
    %v2514 = vadd.f32 %v2513, %v2451
    %v2515 = vadd.f32 %v2514, %v2452
    %v2516 = vadd.f32 %v2515, %v2453
    %v2517 = vadd.f32 %v2516, %v2454
    %v2518 = vadd.f32 %v2517, %v2455
    %v2519 = vadd.f32 %v2518, %v2456
    %v2520 = vadd.f32 %v2519, %v2457
    %v2521 = vadd.f32 %v2520, %v2458
    %v2522 = vadd.f32 %v2521, %v2459
    %v2523 = vadd.f32 %v2522, %v2460
    %v2524 = vadd.f32 %v2523, %v2461
    %v2525 = vadd.f32 %v2524, %v2462
    %v2526 = vadd.f32 %v2525, %v2463
    %v2527 = vadd.f32 %v2526, %v2464
    %v2528 = vadd.f32 %v2527, %v2465
    %v2529 = vadd.f32 %v2528, %v2466
    %v2530 = vadd.f32 %v2529, %v2467
    %v2531 = vadd.f32 %v2530, %v2468
    %v2532 = vadd.f32 %v2531, %v2469
    %v2533 = vadd.f32 %v2532, %v2470
    %v2534 = vadd.f32 %v2533, %v2471
    %v2535 = vadd.f32 %v2534, %v2472
    %v2536 = vadd.f32 %v2535, %v2473
    %v2537 = vadd.f32 %v2536, %v2474
    %v2538 = vadd.f32 %v2537, %v2475
    %v2539 = vadd.f32 %v2538, %v2476
    %v2540 = vadd.f32 %v2539, %v2477
    %v2541 = vadd.f32 %v2540, %v2478
    %v2542 = vadd.f32 %v2541, %v2479
    %v2543 = vadd.f32 %v2542, %v2480
    %v2544 = vadd.f32 %v2543, %v2481
    %v2545 = vadd.f32 %v2544, %v2482
    %v2546 = vadd.f32 %v2545, %v2483
    %v2547 = vadd.f32 %v2546, %v2484
    %v2548 = vadd.f32 %v2547, %v2485
    %v2549 = vadd.f32 %v2548, %v2486
    %v2550 = vadd.f32 %v2549, %v2487
    %v2551 = vadd.f32 %v2550, %v2488
    %v2552 = vadd.f32 %v2551, %v2489
    %v2553 = vadd.f32 %v2552, %v2490
    %v2554 = vadd.f32 %v2553, %v2491
    %v2555 = vadd.f32 %v2554, %v2492
    %v2556 = vadd.f32 %v2555, %v2493
    %v2557 = vrot.slane %v2556, 4
    %v2558 = vadd.f32 %v2556, %v2557
    %v2559 = vrot.slane %v2558, 2
    %v2560 = vadd.f32 %v2558, %v2559
    %v2561 = vrot.slane %v2560, 1
    %v2562 = vadd.f32 %v2560, %v2561
    %v2563 = vmul.f32 %v2429, 0.002
    %v2564 = vmul.f32 %v2562, 0.002
    %v2565 = vmul.f32 %v2563, %v2563
    %v2566 = vsub.f32 %v2564, %v2565
    %v2567 = vmax.f32 %v2566, 0.0
    %v2568 = vsub.f32 %v2202, %v2563
    %v2569 = vsub.f32 %v2204, %v2563
    %v2570 = vsub.f32 %v2207, %v2563
    %v2571 = vsub.f32 %v2209, %v2563
    %v2572 = vsub.f32 %v2212, %v2563
    %v2573 = vsub.f32 %v2214, %v2563
    %v2574 = vsub.f32 %v2217, %v2563
    %v2575 = vsub.f32 %v2219, %v2563
    %v2576 = vsub.f32 %v2222, %v2563
    %v2577 = vsub.f32 %v2224, %v2563
    %v2578 = vsub.f32 %v2227, %v2563
    %v2579 = vsub.f32 %v2229, %v2563
    %v2580 = vsub.f32 %v2232, %v2563
    %v2581 = vsub.f32 %v2234, %v2563
    %v2582 = vsub.f32 %v2237, %v2563
    %v2583 = vsub.f32 %v2239, %v2563
    %v2584 = vsub.f32 %v2242, %v2563
    %v2585 = vsub.f32 %v2244, %v2563
    %v2586 = vsub.f32 %v2247, %v2563
    %v2587 = vsub.f32 %v2249, %v2563
    %v2588 = vsub.f32 %v2252, %v2563
    %v2589 = vsub.f32 %v2254, %v2563
    %v2590 = vsub.f32 %v2257, %v2563
    %v2591 = vsub.f32 %v2259, %v2563
    %v2592 = vsub.f32 %v2262, %v2563
    %v2593 = vsub.f32 %v2264, %v2563
    %v2594 = vsub.f32 %v2267, %v2563
    %v2595 = vsub.f32 %v2269, %v2563
    %v2596 = vsub.f32 %v2272, %v2563
    %v2597 = vsub.f32 %v2274, %v2563
    %v2598 = vsub.f32 %v2277, %v2563
    %v2599 = vsub.f32 %v2279, %v2563
    %v2600 = vsub.f32 %v2282, %v2563
    %v2601 = vsub.f32 %v2284, %v2563
    %v2602 = vsub.f32 %v2287, %v2563
    %v2603 = vsub.f32 %v2289, %v2563
    %v2604 = vsub.f32 %v2292, %v2563
    %v2605 = vsub.f32 %v2294, %v2563
    %v2606 = vsub.f32 %v2297, %v2563
    %v2607 = vsub.f32 %v2299, %v2563
    %v2608 = vsub.f32 %v2302, %v2563
    %v2609 = vsub.f32 %v2304, %v2563
    %v2610 = vsub.f32 %v2307, %v2563
    %v2611 = vsub.f32 %v2309, %v2563
    %v2612 = vsub.f32 %v2312, %v2563
    %v2613 = vsub.f32 %v2314, %v2563
    %v2614 = vsub.f32 %v2317, %v2563
    %v2615 = vsub.f32 %v2319, %v2563
    %v2616 = vsub.f32 %v2322, %v2563
    %v2617 = vsub.f32 %v2324, %v2563
    %v2618 = vsub.f32 %v2327, %v2563
    %v2619 = vsub.f32 %v2329, %v2563
    %v2620 = vsub.f32 %v2332, %v2563
    %v2621 = vsub.f32 %v2334, %v2563
    %v2622 = vsub.f32 %v2337, %v2563
    %v2623 = vsub.f32 %v2339, %v2563
    %v2624 = vsub.f32 %v2342, %v2563
    %v2625 = vsub.f32 %v2344, %v2563
    %v2626 = vsub.f32 %v2347, %v2563
    %v2627 = vsub.f32 %v2349, %v2563
    %v2628 = vsub.f32 %v2352, %v2563
    %v2629 = vsub.f32 %v2354, %v2563
    %v2630 = vsub.f32 %v2357, %v2563
    %v2631 = vsub.f32 %v2359, %v2563
    %v2632 = vadd.f32 %v2567, 1e-05
    %v2633 = vrsqrt.pop %v2632
    %v2634 = vmul.f32 %v2633, %v2632
    %v2635 = vmul.f32 %v2634, %v2633
    %v2636 = vmul.f32 0.5, %v2635
    %v2637 = vsub.f32 1.5, %v2636
    %v2638 = vmul.f32 %v2633, %v2637
    %vm2639 = vweird.f32 %v2632
    %vm2640 = vweird.f32 %v2633
    %vm2641 = vmor %vm2639, %vm2640
    %v2642 = vsel %vm2641, %v2633, %v2638
    %v2643 = vmul.f32 %v2568, %v2642
    %v2644 = vmul.f32 %v2569, %v2642
    %v2645 = vmul.f32 %v2570, %v2642
    %v2646 = vmul.f32 %v2571, %v2642
    %v2647 = vmul.f32 %v2572, %v2642
    %v2648 = vmul.f32 %v2573, %v2642
    %v2649 = vmul.f32 %v2574, %v2642
    %v2650 = vmul.f32 %v2575, %v2642
    %v2651 = vmul.f32 %v2576, %v2642
    %v2652 = vmul.f32 %v2577, %v2642
    %v2653 = vmul.f32 %v2578, %v2642
    %v2654 = vmul.f32 %v2579, %v2642
    %v2655 = vmul.f32 %v2580, %v2642
    %v2656 = vmul.f32 %v2581, %v2642
    %v2657 = vmul.f32 %v2582, %v2642
    %v2658 = vmul.f32 %v2583, %v2642
    %v2659 = vmul.f32 %v2584, %v2642
    %v2660 = vmul.f32 %v2585, %v2642
    %v2661 = vmul.f32 %v2586, %v2642
    %v2662 = vmul.f32 %v2587, %v2642
    %v2663 = vmul.f32 %v2588, %v2642
    %v2664 = vmul.f32 %v2589, %v2642
    %v2665 = vmul.f32 %v2590, %v2642
    %v2666 = vmul.f32 %v2591, %v2642
    %v2667 = vmul.f32 %v2592, %v2642
    %v2668 = vmul.f32 %v2593, %v2642
    %v2669 = vmul.f32 %v2594, %v2642
    %v2670 = vmul.f32 %v2595, %v2642
    %v2671 = vmul.f32 %v2596, %v2642
    %v2672 = vmul.f32 %v2597, %v2642
    %v2673 = vmul.f32 %v2598, %v2642
    %v2674 = vmul.f32 %v2599, %v2642
    %v2675 = vmul.f32 %v2600, %v2642
    %v2676 = vmul.f32 %v2601, %v2642
    %v2677 = vmul.f32 %v2602, %v2642
    %v2678 = vmul.f32 %v2603, %v2642
    %v2679 = vmul.f32 %v2604, %v2642
    %v2680 = vmul.f32 %v2605, %v2642
    %v2681 = vmul.f32 %v2606, %v2642
    %v2682 = vmul.f32 %v2607, %v2642
    %v2683 = vmul.f32 %v2608, %v2642
    %v2684 = vmul.f32 %v2609, %v2642
    %v2685 = vmul.f32 %v2610, %v2642
    %v2686 = vmul.f32 %v2611, %v2642
    %v2687 = vmul.f32 %v2612, %v2642
    %v2688 = vmul.f32 %v2613, %v2642
    %v2689 = vmul.f32 %v2614, %v2642
    %v2690 = vmul.f32 %v2615, %v2642
    %v2691 = vmul.f32 %v2616, %v2642
    %v2692 = vmul.f32 %v2617, %v2642
    %v2693 = vmul.f32 %v2618, %v2642
    %v2694 = vmul.f32 %v2619, %v2642
    %v2695 = vmul.f32 %v2620, %v2642
    %v2696 = vmul.f32 %v2621, %v2642
    %v2697 = vmul.f32 %v2622, %v2642
    %v2698 = vmul.f32 %v2623, %v2642
    %v2699 = vmul.f32 %v2624, %v2642
    %v2700 = vmul.f32 %v2625, %v2642
    %v2701 = vmul.f32 %v2626, %v2642
    %v2702 = vmul.f32 %v2627, %v2642
    %v2703 = vmul.f32 %v2628, %v2642
    %v2704 = vmul.f32 %v2629, %v2642
    %v2705 = vmul.f32 %v2630, %v2642
    %v2706 = vmul.f32 %v2631, %v2642
    %2707 = vst [vmem:[#allocation2] sm:$0xff] %v2643
    %2708 = vst [vmem:[#allocation2 + $0x8] sm:$0xff] %v2644
    %2709 = vst [vmem:[#allocation2 + $0x10] sm:$0xff] %v2645
    %2710 = vst [vmem:[#allocation2 + $0x18] sm:$0xff] %v2646
    %2711 = vst [vmem:[#allocation2 + $0x20] sm:$0xff] %v2647
    %2712 = vst [vmem:[#allocation2 + $0x28] sm:$0xff] %v2648
    %2713 = vst [vmem:[#allocation2 + $0x30] sm:$0xff] %v2649
    %2714 = vst [vmem:[#allocation2 + $0x38] sm:$0xff] %v2650
    %2715 = vst [vmem:[#allocation2 + $0x40] sm:$0xff] %v2651
    %2716 = vst [vmem:[#allocation2 + $0x48] sm:$0xff] %v2652
    %2717 = vst [vmem:[#allocation2 + $0x50] sm:$0xff] %v2653
    %2718 = vst [vmem:[#allocation2 + $0x58] sm:$0xff] %v2654
    %2719 = vst [vmem:[#allocation2 + $0x60] sm:$0xff] %v2655
    %2720 = vst [vmem:[#allocation2 + $0x68] sm:$0xff] %v2656
    %2721 = vst [vmem:[#allocation2 + $0x70] sm:$0xff] %v2657
    %2722 = vst [vmem:[#allocation2 + $0x78] sm:$0xff] %v2658
    %2723 = vst [vmem:[#allocation2 + $0x80] sm:$0xff] %v2659
    %2724 = vst [vmem:[#allocation2 + $0x88] sm:$0xff] %v2660
    %2725 = vst [vmem:[#allocation2 + $0x90] sm:$0xff] %v2661
    %2726 = vst [vmem:[#allocation2 + $0x98] sm:$0xff] %v2662
    %2727 = vst [vmem:[#allocation2 + $0xa0] sm:$0xff] %v2663
    %2728 = vst [vmem:[#allocation2 + $0xa8] sm:$0xff] %v2664
    %2729 = vst [vmem:[#allocation2 + $0xb0] sm:$0xff] %v2665
    %2730 = vst [vmem:[#allocation2 + $0xb8] sm:$0xff] %v2666
    %2731 = vst [vmem:[#allocation2 + $0xc0] sm:$0xff] %v2667
    %2732 = vst [vmem:[#allocation2 + $0xc8] sm:$0xff] %v2668
    %2733 = vst [vmem:[#allocation2 + $0xd0] sm:$0xff] %v2669
    %2734 = vst [vmem:[#allocation2 + $0xd8] sm:$0xff] %v2670
    %2735 = vst [vmem:[#allocation2 + $0xe0] sm:$0xff] %v2671
    %2736 = vst [vmem:[#allocation2 + $0xe8] sm:$0xff] %v2672
    %2737 = vst [vmem:[#allocation2 + $0xf0] sm:$0xff] %v2673
    %2738 = vst [vmem:[#allocation2 + $0xf8] sm:$0xff] %v2674
    %2739 = vst [vmem:[#allocation2 + $0x100] sm:$0xff] %v2675
    %2740 = vst [vmem:[#allocation2 + $0x108] sm:$0xff] %v2676
    %2741 = vst [vmem:[#allocation2 + $0x110] sm:$0xff] %v2677
    %2742 = vst [vmem:[#allocation2 + $0x118] sm:$0xff] %v2678
    %2743 = vst [vmem:[#allocation2 + $0x120] sm:$0xff] %v2679
    %2744 = vst [vmem:[#allocation2 + $0x128] sm:$0xff] %v2680
    %2745 = vst [vmem:[#allocation2 + $0x130] sm:$0xff] %v2681
    %2746 = vst [vmem:[#allocation2 + $0x138] sm:$0xff] %v2682
    %2747 = vst [vmem:[#allocation2 + $0x140] sm:$0xff] %v2683
    %2748 = vst [vmem:[#allocation2 + $0x148] sm:$0xff] %v2684
    %2749 = vst [vmem:[#allocation2 + $0x150] sm:$0xff] %v2685
    %2750 = vst [vmem:[#allocation2 + $0x158] sm:$0xff] %v2686
    %2751 = vst [vmem:[#allocation2 + $0x160] sm:$0xff] %v2687
    %2752 = vst [vmem:[#allocation2 + $0x168] sm:$0xff] %v2688
    %2753 = vst [vmem:[#allocation2 + $0x170] sm:$0xff] %v2689
    %2754 = vst [vmem:[#allocation2 + $0x178] sm:$0xff] %v2690
    %2755 = vst [vmem:[#allocation2 + $0x180] sm:$0xff] %v2691
    %2756 = vst [vmem:[#allocation2 + $0x188] sm:$0xff] %v2692
    %2757 = vst [vmem:[#allocation2 + $0x190] sm:$0xff] %v2693
    %2758 = vst [vmem:[#allocation2 + $0x198] sm:$0xff] %v2694
    %2759 = vst [vmem:[#allocation2 + $0x1a0] sm:$0xff] %v2695
    %2760 = vst [vmem:[#allocation2 + $0x1a8] sm:$0xff] %v2696
    %2761 = vst [vmem:[#allocation2 + $0x1b0] sm:$0xff] %v2697
    %2762 = vst [vmem:[#allocation2 + $0x1b8] sm:$0xff] %v2698
    %2763 = vst [vmem:[#allocation2 + $0x1c0] sm:$0xff] %v2699
    %2764 = vst [vmem:[#allocation2 + $0x1c8] sm:$0xff] %v2700
    %2765 = vst [vmem:[#allocation2 + $0x1d0] sm:$0xff] %v2701
    %2766 = vst [vmem:[#allocation2 + $0x1d8] sm:$0xff] %v2702
    %2767 = vst [vmem:[#allocation2 + $0x1e0] sm:$0xff] %v2703
    %2768 = vst [vmem:[#allocation2 + $0x1e8] sm:$0xff] %v2704
    %2769 = vst [vmem:[#allocation2 + $0x1f0] sm:$0xff] %v2705
    %2770 = vst [vmem:[#allocation2 + $0x1f8] sm:$0xff] %v2706
    // Predicated region
    $region22: #{tpu_custom_call.1} parent=1 // pred_check
      _
    $region23: #{tpu_custom_call.1} parent=1 // pred_check_branch
      %2772 = sbr.rel (0) target = $region25
    $region24: #{tpu_custom_call.1} parent=1 // pred_region
      %2774 = vsyncadd [#allocation3], 0
      %s2775 = sshll.u32 [#allocation2], 4
      %s2776 = int_to_ptr.vmem [resolvable:$true] %s2775
      %s2777 = sshll.u32 %s5, 4
      %s2778 = int_to_ptr.hbm [resolvable:$true] %s2777
      %2783 = dma.vmem_to_hbm [thread:$0]  %s2776, 8192, %s2778, [#allocation3], 128, 128, 8
    $region25: #{tpu_custom_call.1} parent=1 // pred_fallthru
      _
    // Predicated region
    $region26: #{tpu_custom_call.1} parent=1 // pred_check
      _
    $region27: #{tpu_custom_call.1} parent=1 // pred_check_branch
      %2785 = sbr.rel (0) target = $region29
    $region28: #{tpu_custom_call.1} parent=1 // pred_region
      %2787 = dma.done [#allocation3], 8192
    $region29: #{tpu_custom_call.1} parent=1 // pred_fallthru
      _
    %2788 = vsyncpa [#allocation3], 1

</llo_original>
